<compile_context>
chip_gen: v6e
topology: v6e:2x2x1
jax: 0.10.0
libtpu: 0.0.40
codegen_flags: <defaults>
</compile_context>

<pallas_src>
import functools

import jax
import jax.numpy as jnp
from jax.experimental import pallas as pl
from jax.experimental.pallas import tpu as pltpu


def _pick_tm(rows):
    """Row-tile size.

    Prefer >= 4 row tiles (2+ per v7x TensorCore) without shrinking below 128
    (per-grid-step overhead ~0.35 us); otherwise >= 2 tiles; otherwise the
    largest divisor.  The fused layer axis already gives intra-tile
    pipelining, so over-shrinking tm for grid length is not worth it.
    """
    candidates = (1024, 512, 256, 128, 64, 32, 16, 8)
    for c in candidates:
        if c >= 128 and rows % c == 0 and rows // c >= 4:
            return c
    for c in candidates:
        if rows % c == 0 and rows // c >= 2:
            return c
    for c in candidates:
        if rows % c == 0:
            return c
    return rows


def _make_encoder_kernel(*, d, eps, p_drop, training, mxu_bf16):
    """Fused kernel: for each (tm, D) row tile, run all N residual blocks with
    the residual stream resident in VMEM, then the final Encoder LayerNorm."""
    apply_dropout = bool(training) and float(p_drop) > 0.0
    if apply_dropout:
        # Guard the p -> uint32 threshold conversion (p >= 1 would overflow).
        thresh = min(max(int(float(p_drop) * (2.0 ** 32)), 0), 2 ** 32 - 1)
        keep_scale = 1.0 / (1.0 - float(p_drop))

    inv_d = 1.0 / d
    inv_dm1 = 1.0 / (d - 1)

    def layernorm(v, gamma, beta):
        # torch semantics: unbiased std (ddof=1), divide by (std + eps).
        # Two-pass variance (cancellation-safe), exact divide.
        mean = jnp.sum(v, axis=-1, keepdims=True) * inv_d
        centered = v - mean
        var = jnp.sum(centered * centered, axis=-1, keepdims=True) * inv_dm1
        inv = 1.0 / (jnp.sqrt(var) + eps)
        return gamma * (centered * inv) + beta

    def body(seed_ref, x_ref, w_ref, b_ref, g_ref, bt_ref, gf_ref, bf_ref,
             o_ref, acc_ref):
        layer = pl.program_id(1)
        n_layers = pl.num_programs(1)

        # Load the activation from HBM only once per row tile.
        @pl.when(layer == 0)
        def _():
            acc_ref[...] = x_ref[...].astype(jnp.float32)

        x = acc_ref[...]                                     # (TM, D) f32

        # ---- per-layer LayerNorm --------------------------------------------
        normed = layernorm(x, g_ref[...], bt_ref[...])

        # ---- sublayer: Linear(D, D) on the MXU (bf16 operands, f32 acc) ------
        lhs = normed.astype(w_ref.dtype)
        h = jnp.dot(lhs, w_ref[...], preferred_element_type=jnp.float32)
        h = h + b_ref[...]

        # ---- dropout (inverted scaling), training mode only ------------------
        if apply_dropout:
            # Mix row-tile and layer ids into the seed so masks don't repeat.
            pltpu.prng_seed(seed_ref[0]
                            + pl.program_id(0) * jnp.int32(7919)
                            + layer * jnp.int32(104729))
            bits = pltpu.bitcast(pltpu.prng_random_bits(h.shape), jnp.uint32)
            keep = bits >= jnp.uint32(thresh)
            h = jnp.where(keep, h * keep_scale, 0.0)
        # (eval mode: dropout is identity, matching nn.Dropout.eval())

        # ---- residual add; keep the stream resident in VMEM ------------------
        y = x + h
        acc_ref[...] = y

        # ---- final Encoder LayerNorm fused into the last layer step ----------
        @pl.when(layer == n_layers - 1)
        def _():
            o_ref[...] = layernorm(y, gf_ref[...], bf_ref[...]).astype(o_ref.dtype)

    if apply_dropout:
        return body

    def kernel(x_ref, w_ref, b_ref, g_ref, bt_ref, gf_ref, bf_ref,
               o_ref, acc_ref):
        body(None, x_ref, w_ref, b_ref, g_ref, bt_ref, gf_ref, bf_ref,
             o_ref, acc_ref)

    return kernel


@functools.partial(
    jax.jit,
    static_argnames=("p_drop", "training", "eps", "tm", "mxu_bf16"))
def encoder_forward(x, w_stack, b_stack, g_stack, beta_stack,
                    gamma_final, beta_final, seed, mask=None, *,
                    p_drop=0.1, training=False, eps=1e-6, tm=None,
                    mxu_bf16=True):
    """Encoder: N x (pre-norm residual Linear block) followed by LayerNorm.

    x: [B, S, D]; w_stack: [N, D, D]; b_stack/g_stack/beta_stack: [N, D];
    gamma_final/beta_final: [D].
    """
    del mask  # TODO(synk): generic layer(x, mask) body is not defined in the spec.
    B, S, D = x.shape
    rows = B * S
    if tm is None:
        tm = _pick_tm(rows)
    assert rows % tm == 0

    n_layers = w_stack.shape[0]
    x2d = x.reshape(rows, D)

    # Weight stack cast to bf16 ONCE (no per-layer convert kernels).
    w_in = w_stack.astype(jnp.bfloat16) if mxu_bf16 else w_stack
    b_in = b_stack.reshape(n_layers, 1, D)
    g_in = g_stack.reshape(n_layers, 1, D)
    bt_in = beta_stack.reshape(n_layers, 1, D)
    gf_in = gamma_final.reshape(1, D)
    bf_in = beta_final.reshape(1, D)

    apply_dropout = bool(training) and float(p_drop) > 0.0
    kernel = _make_encoder_kernel(d=D, eps=eps, p_drop=p_drop,
                                  training=training, mxu_bf16=mxu_bf16)

    grid = (rows // tm, n_layers)    # row axis parallel, layer axis innermost

    def _imap(f):
        # With scalar prefetch, index_maps receive the prefetch ref as a
        # trailing positional argument.
        if apply_dropout:
            return lambda r, l, seed_ref: f(r, l)
        return f

    in_specs = [
        pl.BlockSpec((tm, D), _imap(lambda r, l: (r, 0))),           # x rows
        pl.BlockSpec((None, D, D), _imap(lambda r, l: (l, 0, 0))),   # W[l]
        pl.BlockSpec((None, 1, D), _imap(lambda r, l: (l, 0, 0))),   # bias[l]
        pl.BlockSpec((None, 1, D), _imap(lambda r, l: (l, 0, 0))),   # LN a_2[l]
        pl.BlockSpec((None, 1, D), _imap(lambda r, l: (l, 0, 0))),   # LN b_2[l]
        pl.BlockSpec((1, D), _imap(lambda r, l: (0, 0))),            # final a_2
        pl.BlockSpec((1, D), _imap(lambda r, l: (0, 0))),            # final b_2
    ]
    out_spec = pl.BlockSpec((tm, D), _imap(lambda r, l: (r, 0)))
    scratch = [pltpu.VMEM((tm, D), jnp.float32)]   # resident residual stream

    operands = (x2d, w_in, b_in, g_in, bt_in, gf_in, bf_in)
    if apply_dropout:
        seed_arr = jnp.asarray([seed], dtype=jnp.int32)
        grid_spec = pltpu.PrefetchScalarGridSpec(
            num_scalar_prefetch=1, grid=grid,
            in_specs=in_specs, out_specs=out_spec, scratch_shapes=scratch)
        alias = {1: 0}            # x is operand 1 (after the prefetch seed)
        call_args = (seed_arr,) + operands
    else:
        grid_spec = pltpu.PrefetchScalarGridSpec(
            num_scalar_prefetch=0, grid=grid,
            in_specs=in_specs, out_specs=out_spec, scratch_shapes=scratch)
        alias = {0: 0}            # x is operand 0
        call_args = operands

    # VMEM footprint at D=128: ~1 MiB (x/out tiles double-buffered + scratch +
    # bf16 weight double buffer) -- far under the scoped default everywhere.
    # TODO(synk): for D >~ 2048 on v7x (64 MiB VMEM) add a K sub-tiling grid
    #             axis for the weight and set vmem_limit_bytes explicitly.
    out2d = pl.pallas_call(
        kernel,
        out_shape=jax.ShapeDtypeStruct((rows, D), x.dtype),
        grid_spec=grid_spec,
        input_output_aliases=alias,
        compiler_params=pltpu.CompilerParams(
            dimension_semantics=("parallel", "arbitrary")),
    )(*call_args)

    return out2d.reshape(B, S, D)


def _reference_encoder(x, w_stack, b_stack, g_stack, beta_stack,
                       gamma_final, beta_final, eps=1e-6):
    """Pure-JAX (f32) reference matching the PyTorch module in eval mode."""
    def ln(v, g, b):
        mean = jnp.mean(v, axis=-1, keepdims=True)
        std = jnp.sqrt(jnp.sum((v - mean) ** 2, axis=-1, keepdims=True)
                       / (v.shape[-1] - 1))
        return g * (v - mean) / (std + eps) + b

    xf = x.astype(jnp.float32)
    for i in range(w_stack.shape[0]):
        xf = xf + ln(xf, g_stack[i], beta_stack[i]) @ w_stack[i] + b_stack[i]
    return ln(xf, gamma_final, beta_final)


if __name__ == "__main__":
    B, S, D, N = 2, 128, 128, 2   # batch, seq, hidden, num encoder layers

    key = jax.random.PRNGKey(0)
    kx, kw, kb = jax.random.split(key, 3)

    x = jax.random.normal(kx, (B, S, D), dtype=jnp.float32)
    mask = jnp.ones((B, 1, S), dtype=jnp.float32)   # accepted, unused here

    # Sublayer = Linear(D, D), deterministic init (like nn.Linear's uniform).
    bound = 1.0 / (D ** 0.5)
    w0 = jax.random.uniform(kw, (D, D), jnp.float32, -bound, bound)
    b0 = jax.random.uniform(kb, (D,), jnp.float32, -bound, bound)

    # clones(): N identical deep copies of the layer at init.
    w_stack = jnp.broadcast_to(w0, (N, D, D))
    b_stack = jnp.broadcast_to(b0, (N, D))
    g_stack = jnp.ones((N, D), jnp.float32)       # per-layer LayerNorm a_2
    beta_stack = jnp.zeros((N, D), jnp.float32)   # per-layer LayerNorm b_2
    gamma_final = jnp.ones((D,), jnp.float32)     # final Encoder norm a_2
    beta_final = jnp.zeros((D,), jnp.float32)     # final Encoder norm b_2

    # Eval mode (dropout = identity).  The training path uses the TPU PRNG;
    # TODO(synk): torch-RNG-identical dropout masks are not reproducible on TPU.
    out = encoder_forward(x, w_stack, b_stack, g_stack, beta_stack,
                          gamma_final, beta_final, seed=0, mask=mask,
                          p_drop=0.1, training=False)
    out = jax.block_until_ready(out)

    ref = _reference_encoder(x, w_stack, b_stack, g_stack, beta_stack,
                             gamma_final, beta_final)
    err = float(jnp.max(jnp.abs(out - ref)))
    # bf16 MXU operands (f32 accumulation) vs the all-f32 reference -> relaxed
    # tolerance; LN itself is now exact-divide two-pass f32.
    assert jnp.allclose(out, ref, atol=3e-2, rtol=3e-2), f"max err {err}"
    print("KERNEL_OK")
</pallas_src>

<mosaic_0001>
module attributes {stable_mosaic.version = 11 : i64} {
  func.func @kernel(%arg0: i32, %arg1: i32, %arg2: memref<128x128xf32, #tpu.memory_space<vmem>>, %arg3: memref<1x128x128xbf16, #tpu.memory_space<vmem>>, %arg4: memref<1x1x128xf32, #tpu.memory_space<vmem>>, %arg5: memref<1x1x128xf32, #tpu.memory_space<vmem>>, %arg6: memref<1x1x128xf32, #tpu.memory_space<vmem>>, %arg7: memref<1x128xf32, #tpu.memory_space<vmem>>, %arg8: memref<1x128xf32, #tpu.memory_space<vmem>>, %arg9: memref<128x128xf32, #tpu.memory_space<vmem>>, %arg10: memref<128x128xf32, #tpu.memory_space<vmem>>) attributes {dimension_semantics = [#tpu.dimension_semantics<parallel>, #tpu.dimension_semantics<arbitrary>], iteration_bounds = array<i64: 2, 2>, scalar_prefetch = 0 : i64, scratch_operands = 1 : i64, tpu.core_type = #tpu.core_type<tc>, window_params = [{transform_indices = @transform_0, window_bounds = array<i64: 128, 128>}, {transform_indices = @transform_1, window_bounds = array<i64: 1, 128, 128>}, {transform_indices = @transform_2, window_bounds = array<i64: 1, 1, 128>}, {transform_indices = @transform_3, window_bounds = array<i64: 1, 1, 128>}, {transform_indices = @transform_4, window_bounds = array<i64: 1, 1, 128>}, {pipeline_mode = #tpu.pipeline_mode<synchronous>, transform_indices = @transform_5, window_bounds = array<i64: 1, 128>}, {pipeline_mode = #tpu.pipeline_mode<synchronous>, transform_indices = @transform_6, window_bounds = array<i64: 1, 128>}, {transform_indices = @transform_7, window_bounds = array<i64: 128, 128>}]} {
    %c0_i32 = arith.constant 0 : i32
    %0 = arith.cmpi eq, %arg1, %c0_i32 : i32
    %1 = arith.extui %0 : i1 to i32
    %c0_i32_0 = arith.constant 0 : i32
    %2 = arith.cmpi ne, %1, %c0_i32_0 : i32
    scf.if %2 {
      %c0_23 = arith.constant 0 : index
      %c0_24 = arith.constant 0 : index
      %43 = vector.load %arg2[%c0_23, %c0_24] : memref<128x128xf32, #tpu.memory_space<vmem>>, vector<128x128xf32>
      %c0_25 = arith.constant 0 : index
      %c0_26 = arith.constant 0 : index
      %44 = vector.load %arg10[%c0_25, %c0_26] : memref<128x128xf32, #tpu.memory_space<vmem>>, vector<128x128xf32>
      tpu.vector_store %arg10[%c0_25, %c0_26], %43 {strides = array<i32>} : memref<128x128xf32, #tpu.memory_space<vmem>>, vector<128x128xf32>,
    } else {
    }
    %c0 = arith.constant 0 : index
    %c0_1 = arith.constant 0 : index
    %3 = vector.load %arg10[%c0, %c0_1] : memref<128x128xf32, #tpu.memory_space<vmem>>, vector<128x128xf32>
    %c0_2 = arith.constant 0 : index
    %c0_3 = arith.constant 0 : index
    %c0_4 = arith.constant 0 : index
    %4 = vector.load %arg5[%c0_2, %c0_3, %c0_4] : memref<1x1x128xf32, #tpu.memory_space<vmem>>, vector<1x1x128xf32>
    %5 = vector.shape_cast %4 : vector<1x1x128xf32> to vector<1x128xf32>
    %c0_5 = arith.constant 0 : index
    %c0_6 = arith.constant 0 : index
    %c0_7 = arith.constant 0 : index
    %6 = vector.load %arg6[%c0_5, %c0_6, %c0_7] : memref<1x1x128xf32, #tpu.memory_space<vmem>>, vector<1x1x128xf32>
    %7 = vector.shape_cast %6 : vector<1x1x128xf32> to vector<1x128xf32>
    %cst = arith.constant dense<0.000000e+00> : vector<128xf32>
    %8 = vector.multi_reduction <add>, %3, %cst [1] : vector<128x128xf32> to vector<128xf32>
    %9 = vector.shape_cast %8 : vector<128xf32> to vector<128x1xf32>
    %cst_8 = arith.constant 7.812500e-03 : f32
    %10 = vector.broadcast %cst_8 : f32 to vector<128x1xf32>
    %11 = arith.mulf %9, %10 : vector<128x1xf32>
    %12 = vector.broadcast %11 : vector<128x1xf32> to vector<128x128xf32>
    %13 = arith.subf %3, %12 : vector<128x128xf32>
    %14 = arith.mulf %13, %13 : vector<128x128xf32>
    %cst_9 = arith.constant dense<0.000000e+00> : vector<128xf32>
    %15 = vector.multi_reduction <add>, %14, %cst_9 [1] : vector<128x128xf32> to vector<128xf32>
    %16 = vector.shape_cast %15 : vector<128xf32> to vector<128x1xf32>
    %cst_10 = arith.constant 0.00787401571 : f32
    %17 = vector.broadcast %cst_10 : f32 to vector<128x1xf32>
    %18 = arith.mulf %16, %17 : vector<128x1xf32>
    %19 = math.sqrt %18 : vector<128x1xf32>
    %cst_11 = arith.constant 9.99999997E-7 : f32
    %20 = vector.broadcast %cst_11 : f32 to vector<128x1xf32>
    %21 = arith.addf %19, %20 : vector<128x1xf32>
    %cst_12 = arith.constant 1.000000e+00 : f32
    %22 = vector.broadcast %cst_12 : f32 to vector<128x1xf32>
    %23 = arith.divf %22, %21 : vector<128x1xf32>
    %24 = vector.broadcast %23 : vector<128x1xf32> to vector<128x128xf32>
    %25 = arith.mulf %13, %24 : vector<128x128xf32>
    %26 = vector.broadcast %5 : vector<1x128xf32> to vector<128x128xf32>
    %27 = arith.mulf %26, %25 : vector<128x128xf32>
    %28 = vector.broadcast %7 : vector<1x128xf32> to vector<128x128xf32>
    %29 = arith.addf %27, %28 : vector<128x128xf32>
    %30 = arith.truncf %29 : vector<128x128xf32> to vector<128x128xbf16>
    %c0_13 = arith.constant 0 : index
    %c0_14 = arith.constant 0 : index
    %c0_15 = arith.constant 0 : index
    %31 = vector.load %arg3[%c0_13, %c0_14, %c0_15] : memref<1x128x128xbf16, #tpu.memory_space<vmem>>, vector<1x128x128xbf16>
    %32 = vector.shape_cast %31 : vector<1x128x128xbf16> to vector<128x128xbf16>
    %cst_16 = arith.constant dense<0.000000e+00> : vector<128x128xf32>
    %33 = tpu.matmul %30, %32, %cst_16 {dimension_numbers = #tpu.dot_dimension_numbers<[1], [0], [0], [1], [0, 0, 1, 1], [], []>} : vector<128x128xbf16>, vector<128x128xbf16>, vector<128x128xf32> -> vector<128x128xf32>
    %c0_17 = arith.constant 0 : index
    %c0_18 = arith.constant 0 : index
    %c0_19 = arith.constant 0 : index
    %34 = vector.load %arg4[%c0_17, %c0_18, %c0_19] : memref<1x1x128xf32, #tpu.memory_space<vmem>>, vector<1x1x128xf32>
    %35 = vector.shape_cast %34 : vector<1x1x128xf32> to vector<1x128xf32>
    %36 = vector.broadcast %35 : vector<1x128xf32> to vector<128x128xf32>
    %37 = arith.addf %33, %36 : vector<128x128xf32>
    %38 = arith.addf %3, %37 : vector<128x128xf32>
    %c0_20 = arith.constant 0 : index
    %c0_21 = arith.constant 0 : index
    %39 = vector.load %arg10[%c0_20, %c0_21] : memref<128x128xf32, #tpu.memory_space<vmem>>, vector<128x128xf32>
    tpu.vector_store %arg10[%c0_20, %c0_21], %38 {strides = array<i32>} : memref<128x128xf32, #tpu.memory_space<vmem>>, vector<128x128xf32>,
    %c1_i32 = arith.constant 1 : i32
    %40 = arith.cmpi eq, %arg1, %c1_i32 : i32
    %41 = arith.extui %40 : i1 to i32
    %c0_i32_22 = arith.constant 0 : i32
    %42 = arith.cmpi ne, %41, %c0_i32_22 : i32
    scf.if %42 {
      %c0_23 = arith.constant 0 : index
      %c0_24 = arith.constant 0 : index
      %43 = vector.load %arg7[%c0_23, %c0_24] : memref<1x128xf32, #tpu.memory_space<vmem>>, vector<1x128xf32>
      %c0_25 = arith.constant 0 : index
      %c0_26 = arith.constant 0 : index
      %44 = vector.load %arg8[%c0_25, %c0_26] : memref<1x128xf32, #tpu.memory_space<vmem>>, vector<1x128xf32>
      %cst_27 = arith.constant dense<0.000000e+00> : vector<128xf32>
      %45 = vector.multi_reduction <add>, %38, %cst_27 [1] : vector<128x128xf32> to vector<128xf32>
      %46 = vector.shape_cast %45 : vector<128xf32> to vector<128x1xf32>
      %cst_28 = arith.constant 7.812500e-03 : f32
      %47 = vector.broadcast %cst_28 : f32 to vector<128x1xf32>
      %48 = arith.mulf %46, %47 : vector<128x1xf32>
      %49 = vector.broadcast %48 : vector<128x1xf32> to vector<128x128xf32>
      %50 = arith.subf %38, %49 : vector<128x128xf32>
      %51 = arith.mulf %50, %50 : vector<128x128xf32>
      %cst_29 = arith.constant dense<0.000000e+00> : vector<128xf32>
      %52 = vector.multi_reduction <add>, %51, %cst_29 [1] : vector<128x128xf32> to vector<128xf32>
      %53 = vector.shape_cast %52 : vector<128xf32> to vector<128x1xf32>
      %cst_30 = arith.constant 0.00787401571 : f32
      %54 = vector.broadcast %cst_30 : f32 to vector<128x1xf32>
      %55 = arith.mulf %53, %54 : vector<128x1xf32>
      %56 = math.sqrt %55 : vector<128x1xf32>
      %cst_31 = arith.constant 9.99999997E-7 : f32
      %57 = vector.broadcast %cst_31 : f32 to vector<128x1xf32>
      %58 = arith.addf %56, %57 : vector<128x1xf32>
      %cst_32 = arith.constant 1.000000e+00 : f32
      %59 = vector.broadcast %cst_32 : f32 to vector<128x1xf32>
      %60 = arith.divf %59, %58 : vector<128x1xf32>
      %61 = vector.broadcast %60 : vector<128x1xf32> to vector<128x128xf32>
      %62 = arith.mulf %50, %61 : vector<128x128xf32>
      %63 = vector.broadcast %43 : vector<1x128xf32> to vector<128x128xf32>
      %64 = arith.mulf %63, %62 : vector<128x128xf32>
      %65 = vector.broadcast %44 : vector<1x128xf32> to vector<128x128xf32>
      %66 = arith.addf %64, %65 : vector<128x128xf32>
      %c0_33 = arith.constant 0 : index
      %c0_34 = arith.constant 0 : index
      %67 = vector.load %arg9[%c0_33, %c0_34] : memref<128x128xf32, #tpu.memory_space<vmem>>, vector<128x128xf32>
      tpu.vector_store %arg9[%c0_33, %c0_34], %66 {strides = array<i32>} : memref<128x128xf32, #tpu.memory_space<vmem>>, vector<128x128xf32>,
    } else {
    }
    return
  }
  func.func @transform_0(%arg0: i32, %arg1: i32) -> (i32, i32) {
    %c0_i32 = arith.constant 0 : i32
    %c0_i32_0 = arith.constant 0 : i32
    return %arg0, %c0_i32 : i32, i32
  }
  func.func @transform_1(%arg0: i32, %arg1: i32) -> (i32, i32, i32) {
    %c0_i32 = arith.constant 0 : i32
    %c0_i32_0 = arith.constant 0 : i32
    %c0_i32_1 = arith.constant 0 : i32
    return %arg1, %c0_i32, %c0_i32_0 : i32, i32, i32
  }
  func.func @transform_2(%arg0: i32, %arg1: i32) -> (i32, i32, i32) {
    %c0_i32 = arith.constant 0 : i32
    %c0_i32_0 = arith.constant 0 : i32
    %c0_i32_1 = arith.constant 0 : i32
    return %arg1, %c0_i32, %c0_i32_0 : i32, i32, i32
  }
  func.func @transform_3(%arg0: i32, %arg1: i32) -> (i32, i32, i32) {
    %c0_i32 = arith.constant 0 : i32
    %c0_i32_0 = arith.constant 0 : i32
    %c0_i32_1 = arith.constant 0 : i32
    return %arg1, %c0_i32, %c0_i32_0 : i32, i32, i32
  }
  func.func @transform_4(%arg0: i32, %arg1: i32) -> (i32, i32, i32) {
    %c0_i32 = arith.constant 0 : i32
    %c0_i32_0 = arith.constant 0 : i32
    %c0_i32_1 = arith.constant 0 : i32
    return %arg1, %c0_i32, %c0_i32_0 : i32, i32, i32
  }
  func.func @transform_5(%arg0: i32, %arg1: i32) -> (i32, i32) {
    %c0_i32 = arith.constant 0 : i32
    %c0_i32_0 = arith.constant 0 : i32
    %c0_i32_1 = arith.constant 0 : i32
    return %c0_i32, %c0_i32_0 : i32, i32
  }
  func.func @transform_6(%arg0: i32, %arg1: i32) -> (i32, i32) {
    %c0_i32 = arith.constant 0 : i32
    %c0_i32_0 = arith.constant 0 : i32
    %c0_i32_1 = arith.constant 0 : i32
    return %c0_i32, %c0_i32_0 : i32, i32
  }
  func.func @transform_7(%arg0: i32, %arg1: i32) -> (i32, i32) {
    %c0_i32 = arith.constant 0 : i32
    %c0_i32_0 = arith.constant 0 : i32
    return %arg0, %c0_i32 : i32, i32
  }
}

</mosaic_0001>

<llo_original>
// kernel: encoder_forward.1
$region0: #{encoder_forward.1}
  #allocation0 [shape = 'u32[]', space=smem, size = 0x4, offset = 0x4, fixed_abs, tag = 'smem constant byte address 0x4 - core index']
  #allocation1 [shape = 'u32[144,128]{1,0:T(1,128)}', space=vmem, size = 0x12000, scoped, tag = 'internal scratch']
  #allocation2 [shape = 'f32[128,128]{1,0:T(8,128)}', space=vmem, size = 0x10000, scoped, tag = 'scratch operand']
  %s0 = inlined_call_operand.vmem [shape: f32[256,128], index: 0, kind: input, shape index: {}, may-alias: {0,7}]
  %s1 = inlined_call_operand.vmem [shape: bf16[2,128,128], index: 1, kind: input, shape index: {}]
  %s2 = inlined_call_operand.vmem [shape: f32[2,1,128], index: 2, kind: input, shape index: {}]
  %s3 = inlined_call_operand.vmem [shape: f32[2,1,128], index: 3, kind: input, shape index: {}]
  %s4 = inlined_call_operand.vmem [shape: f32[2,1,128], index: 4, kind: input, shape index: {}]
  %s5 = inlined_call_operand.vmem [shape: f32[1,128], index: 5, kind: input, shape index: {}]
  %s6 = inlined_call_operand.vmem [shape: f32[1,128], index: 6, kind: input, shape index: {}]
  %s7 = inlined_call_operand.vmem [shape: f32[256,128], index: 7, kind: output, shape index: {}, may-alias: {0,7}]
  %s8 = sld [smem:[#allocation0]]
  $region69: #{encoder_forward.1} parent=0
    _
  %s10 = ssub.s32 1, %s8
  %s11 = scalar_select 0, %s10, %s8
  loop: start=0, step=1, limit=6
  $region2: #{encoder_forward.1} parent=0 // loop_pre_header
    _
  $region3: #{encoder_forward.1} parent=0 // loop_header
    %s13 = sphi 0, %s17
    %p14 = scmp.ge.s32.totalorder %s13, 6
    %s20 = sphi 0, %s32
    %s21 = sphi 0, %s28
    %s22 = sphi 0, %s20
    %s23 = sphi 0, %s21
    %s24 = sphi 0, %s22
    %s25 = sphi 0, %s23
    %s35 = sphi 0, %s37
    %s38 = sphi 0, %s35
    %s39 = sphi 0, %s38
    %s55 = sphi 0, %s39
    %s61 = sphi 0, %s63
    %s64 = sphi 0, %s61
    %s65 = sphi 0, %s64
    %s81 = sphi 0, %s65
    %s87 = sphi 0, %s89
    %s90 = sphi 0, %s87
    %s91 = sphi 0, %s90
    %s107 = sphi 0, %s91
    %s113 = sphi 0, %s115
    %s116 = sphi 0, %s113
    %s117 = sphi 0, %s116
    %s133 = sphi 0, %s117
    %s139 = sphi 0, %s141
    %s142 = sphi 0, %s139
    %s143 = sphi 0, %s142
    %s159 = sphi 0, %s143
    %s163 = sphi 0, %s163
    %s165 = sphi 0, %s163
    %s166 = sphi 0, %s165
    %s180 = sphi 0, %s166
    %s184 = sphi 0, %s184
    %s186 = sphi 0, %s184
    %s187 = sphi 0, %s186
    %s201 = sphi 0, %s187
    %s207 = sphi 0, %s209
    %s210 = sphi 0, %s207
    %s211 = sphi 0, %s210
    %s227 = sphi 0, %s211
  $region4: #{encoder_forward.1} parent=0 // loop_header_branch
    %16 = sbr.rel (%p14) target = $region8
  $region5: #{encoder_forward.1} parent=0 // loop_body
    %s18 = ssub.s32 %s13, 1
    %s19 = ssub.s32 %s13, 2
    %s26 = sadd.s32 1, %s21
    %p27 = scmp.ge.s32.totalorder %s26, 2
    %s28 = scalar_select %p27, 0, %s26
    %s29 = sadd.s32 1, %s20
    %s30 = scalar_select %p27, %s29, %s20
    %p31 = scmp.ge.s32.totalorder %s30, 2
    %s32 = scalar_select %p31, 0, %s30
    %s33 = ssub.s32 %s20, %s32
    %p34 = scmp.eq.s32.totalorder %s33, 0
    %s36 = sadd.s32 %s35, 1
    %s37 = scalar_select %p34, %s35, %s36
    %p40 = pneg %p34
    %p41 = scmp.eq.s32.totalorder %s13, 3
    %p42 = por %p40, %p41
    %p43 = scmp.ne.s32.totalorder %s35, %s38
    %p44 = scmp.eq.s32.totalorder %s13, 0
    %p45 = por %p43, %p44
    %p46 = scmp.ne.s32.totalorder %s35, %s38
    %p47 = scmp.eq.s32.totalorder %s18, 3
    %p48 = por %p46, %p47
    %p49 = scmp.ne.s32.totalorder %s38, %s39
    %p50 = scmp.eq.s32.totalorder %s18, 0
    %p51 = por %p49, %p50
    %p52 = scmp.ne.s32.totalorder %s38, %s39
    %p53 = scmp.eq.s32.totalorder %s19, 3
    %p54 = por %p52, %p53
    %p56 = scmp.ne.s32.totalorder %s39, %s55
    %p57 = scmp.eq.s32.totalorder %s19, 0
    %p58 = por %p56, %p57
    %s59 = ssub.s32 %s21, %s28
    %p60 = scmp.eq.s32.totalorder %s59, 0
    %s62 = sadd.s32 %s61, 1
    %s63 = scalar_select %p60, %s61, %s62
    %p66 = pneg %p60
    %p67 = scmp.eq.s32.totalorder %s13, 3
    %p68 = por %p66, %p67
    %p69 = scmp.ne.s32.totalorder %s61, %s64
    %p70 = scmp.eq.s32.totalorder %s13, 0
    %p71 = por %p69, %p70
    %p72 = scmp.ne.s32.totalorder %s61, %s64
    %p73 = scmp.eq.s32.totalorder %s18, 3
    %p74 = por %p72, %p73
    %p75 = scmp.ne.s32.totalorder %s64, %s65
    %p76 = scmp.eq.s32.totalorder %s18, 0
    %p77 = por %p75, %p76
    %p78 = scmp.ne.s32.totalorder %s64, %s65
    %p79 = scmp.eq.s32.totalorder %s19, 3
    %p80 = por %p78, %p79
    %p82 = scmp.ne.s32.totalorder %s65, %s81
    %p83 = scmp.eq.s32.totalorder %s19, 0
    %p84 = por %p82, %p83
    %s85 = ssub.s32 %s21, %s28
    %p86 = scmp.eq.s32.totalorder %s85, 0
    %s88 = sadd.s32 %s87, 1
    %s89 = scalar_select %p86, %s87, %s88
    %p92 = pneg %p86
    %p93 = scmp.eq.s32.totalorder %s13, 3
    %p94 = por %p92, %p93
    %p95 = scmp.ne.s32.totalorder %s87, %s90
    %p96 = scmp.eq.s32.totalorder %s13, 0
    %p97 = por %p95, %p96
    %p98 = scmp.ne.s32.totalorder %s87, %s90
    %p99 = scmp.eq.s32.totalorder %s18, 3
    %p100 = por %p98, %p99
    %p101 = scmp.ne.s32.totalorder %s90, %s91
    %p102 = scmp.eq.s32.totalorder %s18, 0
    %p103 = por %p101, %p102
    %p104 = scmp.ne.s32.totalorder %s90, %s91
    %p105 = scmp.eq.s32.totalorder %s19, 3
    %p106 = por %p104, %p105
    %p108 = scmp.ne.s32.totalorder %s91, %s107
    %p109 = scmp.eq.s32.totalorder %s19, 0
    %p110 = por %p108, %p109
    %s111 = ssub.s32 %s21, %s28
    %p112 = scmp.eq.s32.totalorder %s111, 0
    %s114 = sadd.s32 %s113, 1
    %s115 = scalar_select %p112, %s113, %s114
    %p118 = pneg %p112
    %p119 = scmp.eq.s32.totalorder %s13, 3
    %p120 = por %p118, %p119
    %p121 = scmp.ne.s32.totalorder %s113, %s116
    %p122 = scmp.eq.s32.totalorder %s13, 0
    %p123 = por %p121, %p122
    %p124 = scmp.ne.s32.totalorder %s113, %s116
    %p125 = scmp.eq.s32.totalorder %s18, 3
    %p126 = por %p124, %p125
    %p127 = scmp.ne.s32.totalorder %s116, %s117
    %p128 = scmp.eq.s32.totalorder %s18, 0
    %p129 = por %p127, %p128
    %p130 = scmp.ne.s32.totalorder %s116, %s117
    %p131 = scmp.eq.s32.totalorder %s19, 3
    %p132 = por %p130, %p131
    %p134 = scmp.ne.s32.totalorder %s117, %s133
    %p135 = scmp.eq.s32.totalorder %s19, 0
    %p136 = por %p134, %p135
    %s137 = ssub.s32 %s21, %s28
    %p138 = scmp.eq.s32.totalorder %s137, 0
    %s140 = sadd.s32 %s139, 1
    %s141 = scalar_select %p138, %s139, %s140
    %p144 = pneg %p138
    %p145 = scmp.eq.s32.totalorder %s13, 3
    %p146 = por %p144, %p145
    %p147 = scmp.ne.s32.totalorder %s139, %s142
    %p148 = scmp.eq.s32.totalorder %s13, 0
    %p149 = por %p147, %p148
    %p150 = scmp.ne.s32.totalorder %s139, %s142
    %p151 = scmp.eq.s32.totalorder %s18, 3
    %p152 = por %p150, %p151
    %p153 = scmp.ne.s32.totalorder %s142, %s143
    %p154 = scmp.eq.s32.totalorder %s18, 0
    %p155 = por %p153, %p154
    %p156 = scmp.ne.s32.totalorder %s142, %s143
    %p157 = scmp.eq.s32.totalorder %s19, 3
    %p158 = por %p156, %p157
    %p160 = scmp.ne.s32.totalorder %s143, %s159
    %p161 = scmp.eq.s32.totalorder %s19, 0
    %p162 = por %p160, %p161
    %s164 = sadd.s32 %s163, 1
    %p167 = scmp.eq.s32.totalorder %s13, 3
    %p168 = scmp.ne.s32.totalorder %s163, %s165
    %p169 = scmp.eq.s32.totalorder %s13, 0
    %p170 = por %p168, %p169
    %p171 = scmp.ne.s32.totalorder %s163, %s165
    %p172 = scmp.eq.s32.totalorder %s18, 3
    %p173 = por %p171, %p172
    %p174 = scmp.ne.s32.totalorder %s165, %s166
    %p175 = scmp.eq.s32.totalorder %s18, 0
    %p176 = por %p174, %p175
    %p177 = scmp.ne.s32.totalorder %s165, %s166
    %p178 = scmp.eq.s32.totalorder %s19, 3
    %p179 = por %p177, %p178
    %p181 = scmp.ne.s32.totalorder %s166, %s180
    %p182 = scmp.eq.s32.totalorder %s19, 0
    %p183 = por %p181, %p182
    %s185 = sadd.s32 %s184, 1
    %p188 = scmp.eq.s32.totalorder %s13, 3
    %p189 = scmp.ne.s32.totalorder %s184, %s186
    %p190 = scmp.eq.s32.totalorder %s13, 0
    %p191 = por %p189, %p190
    %p192 = scmp.ne.s32.totalorder %s184, %s186
    %p193 = scmp.eq.s32.totalorder %s18, 3
    %p194 = por %p192, %p193
    %p195 = scmp.ne.s32.totalorder %s186, %s187
    %p196 = scmp.eq.s32.totalorder %s18, 0
    %p197 = por %p195, %p196
    %p198 = scmp.ne.s32.totalorder %s186, %s187
    %p199 = scmp.eq.s32.totalorder %s19, 3
    %p200 = por %p198, %p199
    %p202 = scmp.ne.s32.totalorder %s187, %s201
    %p203 = scmp.eq.s32.totalorder %s19, 0
    %p204 = por %p202, %p203
    %s205 = ssub.s32 %s20, %s32
    %p206 = scmp.eq.s32.totalorder %s205, 0
    %s208 = sadd.s32 %s207, 1
    %s209 = scalar_select %p206, %s207, %s208
    %p212 = pneg %p206
    %p213 = scmp.eq.s32.totalorder %s13, 3
    %p214 = por %p212, %p213
    %p215 = scmp.ne.s32.totalorder %s207, %s210
    %p216 = scmp.eq.s32.totalorder %s13, 0
    %p217 = por %p215, %p216
    %p218 = scmp.ne.s32.totalorder %s207, %s210
    %p219 = scmp.eq.s32.totalorder %s18, 3
    %p220 = por %p218, %p219
    %p221 = scmp.ne.s32.totalorder %s210, %s211
    %p222 = scmp.eq.s32.totalorder %s18, 0
    %p223 = por %p221, %p222
    %p224 = scmp.ne.s32.totalorder %s210, %s211
    %p225 = scmp.eq.s32.totalorder %s19, 3
    %p226 = por %p224, %p225
    %p228 = scmp.ne.s32.totalorder %s211, %s227
    %p229 = scmp.eq.s32.totalorder %s19, 0
    %p230 = por %p228, %p229
    %p231 = scmp.le.s32.totalorder 1, %s13
    %p232 = scmp.lt.s32.totalorder %s13, 5
    %p233 = pnand %p231, %p232
    %p234 = pneg %p233
    // Predicated region
    $region9: #{encoder_forward.1} parent=5 // pred_check
      _
    $region10: #{encoder_forward.1} parent=5 // pred_check_branch
      %236 = sbr.rel (%p233) target = $region12
    $region11: #{encoder_forward.1} parent=5 // pred_region
      %s237 = ssub.s32 %s13, 1
      // Predicated region
      $region13: #{encoder_forward.1} parent=11 // pred_check
        %p238 = pneg %p176
      $region14: #{encoder_forward.1} parent=11 // pred_check_branch
        %240 = sbr.rel (%p238) target = $region16
      $region15: #{encoder_forward.1} parent=11 // pred_region
        _
      $region16: #{encoder_forward.1} parent=11 // pred_fallthru
        _
      // Predicated region
      $region17: #{encoder_forward.1} parent=11 // pred_check
        %p241 = pneg %p197
      $region18: #{encoder_forward.1} parent=11 // pred_check_branch
        %243 = sbr.rel (%p241) target = $region20
      $region19: #{encoder_forward.1} parent=11 // pred_region
        _
      $region20: #{encoder_forward.1} parent=11 // pred_fallthru
        _
    $region12: #{encoder_forward.1} parent=5 // pred_fallthru
      _
    %p244 = scmp.lt.s32.totalorder %s13, 4
    // Predicated region
    $region21: #{encoder_forward.1} parent=5 // pred_check
      %p245 = pneg %p244
    $region22: #{encoder_forward.1} parent=5 // pred_check_branch
      %247 = sbr.rel (%p245) target = $region24
    $region23: #{encoder_forward.1} parent=5 // pred_region
      // Predicated region
      $region25: #{encoder_forward.1} parent=23 // pred_check
        %p248 = pneg %p45
      $region26: #{encoder_forward.1} parent=23 // pred_check_branch
        %250 = sbr.rel (%p248) target = $region28
      $region27: #{encoder_forward.1} parent=23 // pred_region
        %s251 = smul.u32 16, %s20
        %p252 = scmp.lt.s32.totalorder %s251, 31
        %s253 = scalar_select %p252, %s251, 31
        %s254 = smul.addr %s253, 8
        %s255 = scalar_lea.vmem %s0, %s254
        %s256 = smul.u32 16, %s20
      $region28: #{encoder_forward.1} parent=23 // pred_fallthru
        _
      // Predicated region
      $region29: #{encoder_forward.1} parent=23 // pred_check
        %p257 = pneg %p71
      $region30: #{encoder_forward.1} parent=23 // pred_check_branch
        %259 = sbr.rel (%p257) target = $region32
      $region31: #{encoder_forward.1} parent=23 // pred_region
        %p260 = scmp.lt.s32.totalorder %s21, 1
        %s261 = scalar_select %p260, %s21, 1
        %s262 = smul.addr %s261, 16
        %s263 = smul.addr %s262, 4
        %s264 = scalar_lea.vmem %s1, %s263
      $region32: #{encoder_forward.1} parent=23 // pred_fallthru
        _
      // Predicated region
      $region33: #{encoder_forward.1} parent=23 // pred_check
        %p265 = pneg %p97
      $region34: #{encoder_forward.1} parent=23 // pred_check_branch
        %267 = sbr.rel (%p265) target = $region36
      $region35: #{encoder_forward.1} parent=23 // pred_region
        %p268 = scmp.lt.s32.totalorder %s21, 1
        %s269 = scalar_select %p268, %s21, 1
        %s270 = scalar_lea.vmem %s2, %s269
      $region36: #{encoder_forward.1} parent=23 // pred_fallthru
        _
      // Predicated region
      $region37: #{encoder_forward.1} parent=23 // pred_check
        %p271 = pneg %p123
      $region38: #{encoder_forward.1} parent=23 // pred_check_branch
        %273 = sbr.rel (%p271) target = $region40
      $region39: #{encoder_forward.1} parent=23 // pred_region
        %p274 = scmp.lt.s32.totalorder %s21, 1
        %s275 = scalar_select %p274, %s21, 1
        %s276 = scalar_lea.vmem %s3, %s275
      $region40: #{encoder_forward.1} parent=23 // pred_fallthru
        _
      // Predicated region
      $region41: #{encoder_forward.1} parent=23 // pred_check
        %p277 = pneg %p149
      $region42: #{encoder_forward.1} parent=23 // pred_check_branch
        %279 = sbr.rel (%p277) target = $region44
      $region43: #{encoder_forward.1} parent=23 // pred_region
        %p280 = scmp.lt.s32.totalorder %s21, 1
        %s281 = scalar_select %p280, %s21, 1
        %s282 = scalar_lea.vmem %s4, %s281
      $region44: #{encoder_forward.1} parent=23 // pred_fallthru
        _
    $region24: #{encoder_forward.1} parent=5 // pred_fallthru
      _
    %p283 = scmp.le.s32.totalorder 1, %s13
    %p284 = scmp.lt.s32.totalorder %s13, 5
    %p285 = pnand %p283, %p284
    %p286 = pneg %p285
    // Predicated region
    $region45: #{encoder_forward.1} parent=5 // pred_check
      _
    $region46: #{encoder_forward.1} parent=5 // pred_check_branch
      %288 = sbr.rel (%p285) target = $region48
    $region47: #{encoder_forward.1} parent=5 // pred_region
      %s289 = ssub.s32 %s13, 1
      %s290 = smul.u32 16, %s22
      %p291 = scmp.lt.s32.totalorder %s290, 31
      %s292 = scalar_select %p291, %s290, 31
      %s293 = smul.addr %s292, 8
      %s294 = scalar_lea.vmem %s0, %s293
      %p295 = pneg %p51
      %p296 = pneg %p48
      %p297 = scmp.lt.s32.totalorder %s23, 1
      %s298 = scalar_select %p297, %s23, 1
      %s299 = smul.addr %s298, 16
      %s300 = smul.addr %s299, 4
      %s301 = scalar_lea.vmem %s1, %s300
      %p302 = pneg %p77
      %p303 = pneg %p74
      %p304 = scmp.lt.s32.totalorder %s23, 1
      %s305 = scalar_select %p304, %s23, 1
      %s306 = scalar_lea.vmem %s2, %s305
      %p307 = pneg %p103
      %p308 = pneg %p100
      %p309 = scmp.lt.s32.totalorder %s23, 1
      %s310 = scalar_select %p309, %s23, 1
      %s311 = scalar_lea.vmem %s3, %s310
      %p312 = pneg %p129
      %p313 = pneg %p126
      %p314 = scmp.lt.s32.totalorder %s23, 1
      %s315 = scalar_select %p314, %s23, 1
      %s316 = scalar_lea.vmem %s4, %s315
      %p317 = pneg %p155
      %p318 = pneg %p152
      %p319 = pneg %p176
      %p320 = pneg %p173
      %p321 = pneg %p197
      %p322 = pneg %p194
      %p323 = pneg %p223
      %p324 = pneg %p220
      %s325 = smul.u32 16, %s22
      %p326 = scmp.lt.s32.totalorder %s325, 31
      %s327 = scalar_select %p326, %s325, 31
      %s328 = smul.addr %s327, 8
      %s329 = scalar_lea.vmem %s7, %s328
      %s330 = smul.u32 16, %s22
      %p331 = scmp.lt.s32.totalorder %s330, 31
      %s332 = scalar_select %p331, %s330, 31
      %s333 = smul.addr %s332, 8
      %s334 = scalar_lea.vmem %s0, %s333
      %s335 = smul.u32 16, %s22
      %p336 = scmp.lt.s32.totalorder %s23, 1
      %s337 = scalar_select %p336, %s23, 1
      %s338 = smul.addr %s337, 16
      %s339 = smul.addr %s338, 4
      %s340 = scalar_lea.vmem %s1, %s339
      %p341 = scmp.lt.s32.totalorder %s23, 1
      %s342 = scalar_select %p341, %s23, 1
      %s343 = scalar_lea.vmem %s2, %s342
      %p344 = scmp.lt.s32.totalorder %s23, 1
      %s345 = scalar_select %p344, %s23, 1
      %s346 = scalar_lea.vmem %s3, %s345
      %p347 = scmp.lt.s32.totalorder %s23, 1
      %s348 = scalar_select %p347, %s23, 1
      %s349 = scalar_lea.vmem %s4, %s348
      %s350 = smul.u32 16, %s22
      %p351 = scmp.lt.s32.totalorder %s350, 31
      %s352 = scalar_select %p351, %s350, 31
      %s353 = smul.addr %s352, 8
      %s354 = scalar_lea.vmem %s7, %s353
      %s355 = smul.u32 16, %s22
      %p357 = scmp.eq.s32.totalorder %s23, 0
      // Predicated region
      $region49: #{encoder_forward.1} parent=47 // pred_check
        %p358 = pneg %p357
      $region50: #{encoder_forward.1} parent=47 // pred_check_branch
        %360 = sbr.rel (%p358) target = $region52
      $region51: #{encoder_forward.1} parent=47 // pred_region
        %v361 = vld [vmem:[%s334] sm:$0xff]
        %v362 = vld [vmem:[%s334 + $0x8] sm:$0xff]
        %v363 = vld [vmem:[%s334 + $0x10] sm:$0xff]
        %v364 = vld [vmem:[%s334 + $0x18] sm:$0xff]
        %v365 = vld [vmem:[%s334 + $0x20] sm:$0xff]
        %v366 = vld [vmem:[%s334 + $0x28] sm:$0xff]
        %v367 = vld [vmem:[%s334 + $0x30] sm:$0xff]
        %v368 = vld [vmem:[%s334 + $0x38] sm:$0xff]
        %v369 = vld [vmem:[%s334 + $0x40] sm:$0xff]
        %v370 = vld [vmem:[%s334 + $0x48] sm:$0xff]
        %v371 = vld [vmem:[%s334 + $0x50] sm:$0xff]
        %v372 = vld [vmem:[%s334 + $0x58] sm:$0xff]
        %v373 = vld [vmem:[%s334 + $0x60] sm:$0xff]
        %v374 = vld [vmem:[%s334 + $0x68] sm:$0xff]
        %v375 = vld [vmem:[%s334 + $0x70] sm:$0xff]
        %v376 = vld [vmem:[%s334 + $0x78] sm:$0xff]
        %377 = vst [vmem:[#allocation2] sm:$0xff] %v361
        %378 = vst [vmem:[#allocation2 + $0x8] sm:$0xff] %v362
        %379 = vst [vmem:[#allocation2 + $0x10] sm:$0xff] %v363
        %380 = vst [vmem:[#allocation2 + $0x18] sm:$0xff] %v364
        %381 = vst [vmem:[#allocation2 + $0x20] sm:$0xff] %v365
        %382 = vst [vmem:[#allocation2 + $0x28] sm:$0xff] %v366
        %383 = vst [vmem:[#allocation2 + $0x30] sm:$0xff] %v367
        %384 = vst [vmem:[#allocation2 + $0x38] sm:$0xff] %v368
        %385 = vst [vmem:[#allocation2 + $0x40] sm:$0xff] %v369
        %386 = vst [vmem:[#allocation2 + $0x48] sm:$0xff] %v370
        %387 = vst [vmem:[#allocation2 + $0x50] sm:$0xff] %v371
        %388 = vst [vmem:[#allocation2 + $0x58] sm:$0xff] %v372
        %389 = vst [vmem:[#allocation2 + $0x60] sm:$0xff] %v373
        %390 = vst [vmem:[#allocation2 + $0x68] sm:$0xff] %v374
        %391 = vst [vmem:[#allocation2 + $0x70] sm:$0xff] %v375
        %392 = vst [vmem:[#allocation2 + $0x78] sm:$0xff] %v376
      $region52: #{encoder_forward.1} parent=47 // pred_fallthru
        _
      %v393 = vld [vmem:[#allocation2] sm:$0xff]
      %v394 = vld [vmem:[#allocation2 + $0x8] sm:$0xff]
      %v395 = vld [vmem:[#allocation2 + $0x10] sm:$0xff]
      %v396 = vld [vmem:[#allocation2 + $0x18] sm:$0xff]
      %v397 = vld [vmem:[#allocation2 + $0x20] sm:$0xff]
      %v398 = vld [vmem:[#allocation2 + $0x28] sm:$0xff]
      %v399 = vld [vmem:[#allocation2 + $0x30] sm:$0xff]
      %v400 = vld [vmem:[#allocation2 + $0x38] sm:$0xff]
      %v401 = vld [vmem:[#allocation2 + $0x40] sm:$0xff]
      %v402 = vld [vmem:[#allocation2 + $0x48] sm:$0xff]
      %v403 = vld [vmem:[#allocation2 + $0x50] sm:$0xff]
      %v404 = vld [vmem:[#allocation2 + $0x58] sm:$0xff]
      %v405 = vld [vmem:[#allocation2 + $0x60] sm:$0xff]
      %v406 = vld [vmem:[#allocation2 + $0x68] sm:$0xff]
      %v407 = vld [vmem:[#allocation2 + $0x70] sm:$0xff]
      %v408 = vld [vmem:[#allocation2 + $0x78] sm:$0xff]
      %v409 = vld [vmem:[%s346] sm:$0x1]
      %v410 = vld [vmem:[%s349] sm:$0x1]
      %411 = vadd.xlane.f32.xlu0 %v393
      %v412 = vpop.xlane.xlu0 %411
      %413 = vadd.xlane.f32.xlu0 %v394
      %v414 = vpop.xlane.xlu0 %413
      %415 = vadd.xlane.f32.xlu0 %v395
      %v416 = vpop.xlane.xlu0 %415
      %417 = vadd.xlane.f32.xlu0 %v396
      %v418 = vpop.xlane.xlu0 %417
      %419 = vadd.xlane.f32.xlu0 %v397
      %v420 = vpop.xlane.xlu0 %419
      %421 = vadd.xlane.f32.xlu0 %v398
      %v422 = vpop.xlane.xlu0 %421
      %423 = vadd.xlane.f32.xlu0 %v399
      %v424 = vpop.xlane.xlu0 %423
      %425 = vadd.xlane.f32.xlu0 %v400
      %v426 = vpop.xlane.xlu0 %425
      %427 = vadd.xlane.f32.xlu0 %v401
      %v428 = vpop.xlane.xlu0 %427
      %429 = vadd.xlane.f32.xlu0 %v402
      %v430 = vpop.xlane.xlu0 %429
      %431 = vadd.xlane.f32.xlu0 %v403
      %v432 = vpop.xlane.xlu0 %431
      %433 = vadd.xlane.f32.xlu0 %v404
      %v434 = vpop.xlane.xlu0 %433
      %435 = vadd.xlane.f32.xlu0 %v405
      %v436 = vpop.xlane.xlu0 %435
      %437 = vadd.xlane.f32.xlu0 %v406
      %v438 = vpop.xlane.xlu0 %437
      %439 = vadd.xlane.f32.xlu0 %v407
      %v440 = vpop.xlane.xlu0 %439
      %441 = vadd.xlane.f32.xlu0 %v408
      %v442 = vpop.xlane.xlu0 %441
      %v443 = vmul.f32 %v412, 0.0078125
      %v444 = vmul.f32 %v414, 0.0078125
      %v445 = vmul.f32 %v416, 0.0078125
      %v446 = vmul.f32 %v418, 0.0078125
      %v447 = vmul.f32 %v420, 0.0078125
      %v448 = vmul.f32 %v422, 0.0078125
      %v449 = vmul.f32 %v424, 0.0078125
      %v450 = vmul.f32 %v426, 0.0078125
      %v451 = vmul.f32 %v428, 0.0078125
      %v452 = vmul.f32 %v430, 0.0078125
      %v453 = vmul.f32 %v432, 0.0078125
      %v454 = vmul.f32 %v434, 0.0078125
      %v455 = vmul.f32 %v436, 0.0078125
      %v456 = vmul.f32 %v438, 0.0078125
      %v457 = vmul.f32 %v440, 0.0078125
      %v458 = vmul.f32 %v442, 0.0078125
      %v459 = vsub.f32 %v393, %v443
      %v460 = vsub.f32 %v394, %v444
      %v461 = vsub.f32 %v395, %v445
      %v462 = vsub.f32 %v396, %v446
      %v463 = vsub.f32 %v397, %v447
      %v464 = vsub.f32 %v398, %v448
      %v465 = vsub.f32 %v399, %v449
      %v466 = vsub.f32 %v400, %v450
      %v467 = vsub.f32 %v401, %v451
      %v468 = vsub.f32 %v402, %v452
      %v469 = vsub.f32 %v403, %v453
      %v470 = vsub.f32 %v404, %v454
      %v471 = vsub.f32 %v405, %v455
      %v472 = vsub.f32 %v406, %v456
      %v473 = vsub.f32 %v407, %v457
      %v474 = vsub.f32 %v408, %v458
      %v475 = vmul.f32 %v459, %v459
      %v476 = vmul.f32 %v460, %v460
      %v477 = vmul.f32 %v461, %v461
      %v478 = vmul.f32 %v462, %v462
      %v479 = vmul.f32 %v463, %v463
      %v480 = vmul.f32 %v464, %v464
      %v481 = vmul.f32 %v465, %v465
      %v482 = vmul.f32 %v466, %v466
      %v483 = vmul.f32 %v467, %v467
      %v484 = vmul.f32 %v468, %v468
      %v485 = vmul.f32 %v469, %v469
      %v486 = vmul.f32 %v470, %v470
      %v487 = vmul.f32 %v471, %v471
      %v488 = vmul.f32 %v472, %v472
      %v489 = vmul.f32 %v473, %v473
      %v490 = vmul.f32 %v474, %v474
      %491 = vadd.xlane.f32.xlu0 %v475
      %v492 = vpop.xlane.xlu0 %491
      %493 = vadd.xlane.f32.xlu0 %v476
      %v494 = vpop.xlane.xlu0 %493
      %495 = vadd.xlane.f32.xlu0 %v477
      %v496 = vpop.xlane.xlu0 %495
      %497 = vadd.xlane.f32.xlu0 %v478
      %v498 = vpop.xlane.xlu0 %497
      %499 = vadd.xlane.f32.xlu0 %v479
      %v500 = vpop.xlane.xlu0 %499
      %501 = vadd.xlane.f32.xlu0 %v480
      %v502 = vpop.xlane.xlu0 %501
      %503 = vadd.xlane.f32.xlu0 %v481
      %v504 = vpop.xlane.xlu0 %503
      %505 = vadd.xlane.f32.xlu0 %v482
      %v506 = vpop.xlane.xlu0 %505
      %507 = vadd.xlane.f32.xlu0 %v483
      %v508 = vpop.xlane.xlu0 %507
      %509 = vadd.xlane.f32.xlu0 %v484
      %v510 = vpop.xlane.xlu0 %509
      %511 = vadd.xlane.f32.xlu0 %v485
      %v512 = vpop.xlane.xlu0 %511
      %513 = vadd.xlane.f32.xlu0 %v486
      %v514 = vpop.xlane.xlu0 %513
      %515 = vadd.xlane.f32.xlu0 %v487
      %v516 = vpop.xlane.xlu0 %515
      %517 = vadd.xlane.f32.xlu0 %v488
      %v518 = vpop.xlane.xlu0 %517
      %519 = vadd.xlane.f32.xlu0 %v489
      %v520 = vpop.xlane.xlu0 %519
      %521 = vadd.xlane.f32.xlu0 %v490
      %v522 = vpop.xlane.xlu0 %521
      %v523 = vmul.f32 %v492, 0.007874016
      %v524 = vmul.f32 %v494, 0.007874016
      %v525 = vmul.f32 %v496, 0.007874016
      %v526 = vmul.f32 %v498, 0.007874016
      %v527 = vmul.f32 %v500, 0.007874016
      %v528 = vmul.f32 %v502, 0.007874016
      %v529 = vmul.f32 %v504, 0.007874016
      %v530 = vmul.f32 %v506, 0.007874016
      %v531 = vmul.f32 %v508, 0.007874016
      %v532 = vmul.f32 %v510, 0.007874016
      %v533 = vmul.f32 %v512, 0.007874016
      %v534 = vmul.f32 %v514, 0.007874016
      %v535 = vmul.f32 %v516, 0.007874016
      %v536 = vmul.f32 %v518, 0.007874016
      %v537 = vmul.f32 %v520, 0.007874016
      %v538 = vmul.f32 %v522, 0.007874016
      %v539 = vrsqrt.pop %v523
      %v540 = vmul.f32 %v523, %v539
      %vm541 = vcmp.eq.f32.partialorder %v523, inf
      %v542 = vsel %vm541, %v523, %v540
      %vm543 = vcmp.eq.f32.partialorder %v523, 0.0
      %v544 = vand.u32 %v523, 2147483648
      %v545 = vsel %vm543, %v544, %v542
      %v546 = vrsqrt.pop %v524
      %v547 = vmul.f32 %v524, %v546
      %vm548 = vcmp.eq.f32.partialorder %v524, inf
      %v549 = vsel %vm548, %v524, %v547
      %vm550 = vcmp.eq.f32.partialorder %v524, 0.0
      %v551 = vand.u32 %v524, 2147483648
      %v552 = vsel %vm550, %v551, %v549
      %v553 = vrsqrt.pop %v525
      %v554 = vmul.f32 %v525, %v553
      %vm555 = vcmp.eq.f32.partialorder %v525, inf
      %v556 = vsel %vm555, %v525, %v554
      %vm557 = vcmp.eq.f32.partialorder %v525, 0.0
      %v558 = vand.u32 %v525, 2147483648
      %v559 = vsel %vm557, %v558, %v556
      %v560 = vrsqrt.pop %v526
      %v561 = vmul.f32 %v526, %v560
      %vm562 = vcmp.eq.f32.partialorder %v526, inf
      %v563 = vsel %vm562, %v526, %v561
      %vm564 = vcmp.eq.f32.partialorder %v526, 0.0
      %v565 = vand.u32 %v526, 2147483648
      %v566 = vsel %vm564, %v565, %v563
      %v567 = vrsqrt.pop %v527
      %v568 = vmul.f32 %v527, %v567
      %vm569 = vcmp.eq.f32.partialorder %v527, inf
      %v570 = vsel %vm569, %v527, %v568
      %vm571 = vcmp.eq.f32.partialorder %v527, 0.0
      %v572 = vand.u32 %v527, 2147483648
      %v573 = vsel %vm571, %v572, %v570
      %v574 = vrsqrt.pop %v528
      %v575 = vmul.f32 %v528, %v574
      %vm576 = vcmp.eq.f32.partialorder %v528, inf
      %v577 = vsel %vm576, %v528, %v575
      %vm578 = vcmp.eq.f32.partialorder %v528, 0.0
      %v579 = vand.u32 %v528, 2147483648
      %v580 = vsel %vm578, %v579, %v577
      %v581 = vrsqrt.pop %v529
      %v582 = vmul.f32 %v529, %v581
      %vm583 = vcmp.eq.f32.partialorder %v529, inf
      %v584 = vsel %vm583, %v529, %v582
      %vm585 = vcmp.eq.f32.partialorder %v529, 0.0
      %v586 = vand.u32 %v529, 2147483648
      %v587 = vsel %vm585, %v586, %v584
      %v588 = vrsqrt.pop %v530
      %v589 = vmul.f32 %v530, %v588
      %vm590 = vcmp.eq.f32.partialorder %v530, inf
      %v591 = vsel %vm590, %v530, %v589
      %vm592 = vcmp.eq.f32.partialorder %v530, 0.0
      %v593 = vand.u32 %v530, 2147483648
      %v594 = vsel %vm592, %v593, %v591
      %v595 = vrsqrt.pop %v531
      %v596 = vmul.f32 %v531, %v595
      %vm597 = vcmp.eq.f32.partialorder %v531, inf
      %v598 = vsel %vm597, %v531, %v596
      %vm599 = vcmp.eq.f32.partialorder %v531, 0.0
      %v600 = vand.u32 %v531, 2147483648
      %v601 = vsel %vm599, %v600, %v598
      %v602 = vrsqrt.pop %v532
      %v603 = vmul.f32 %v532, %v602
      %vm604 = vcmp.eq.f32.partialorder %v532, inf
      %v605 = vsel %vm604, %v532, %v603
      %vm606 = vcmp.eq.f32.partialorder %v532, 0.0
      %v607 = vand.u32 %v532, 2147483648
      %v608 = vsel %vm606, %v607, %v605
      %v609 = vrsqrt.pop %v533
      %v610 = vmul.f32 %v533, %v609
      %vm611 = vcmp.eq.f32.partialorder %v533, inf
      %v612 = vsel %vm611, %v533, %v610
      %vm613 = vcmp.eq.f32.partialorder %v533, 0.0
      %v614 = vand.u32 %v533, 2147483648
      %v615 = vsel %vm613, %v614, %v612
      %v616 = vrsqrt.pop %v534
      %v617 = vmul.f32 %v534, %v616
      %vm618 = vcmp.eq.f32.partialorder %v534, inf
      %v619 = vsel %vm618, %v534, %v617
      %vm620 = vcmp.eq.f32.partialorder %v534, 0.0
      %v621 = vand.u32 %v534, 2147483648
      %v622 = vsel %vm620, %v621, %v619
      %v623 = vrsqrt.pop %v535
      %v624 = vmul.f32 %v535, %v623
      %vm625 = vcmp.eq.f32.partialorder %v535, inf
      %v626 = vsel %vm625, %v535, %v624
      %vm627 = vcmp.eq.f32.partialorder %v535, 0.0
      %v628 = vand.u32 %v535, 2147483648
      %v629 = vsel %vm627, %v628, %v626
      %v630 = vrsqrt.pop %v536
      %v631 = vmul.f32 %v536, %v630
      %vm632 = vcmp.eq.f32.partialorder %v536, inf
      %v633 = vsel %vm632, %v536, %v631
      %vm634 = vcmp.eq.f32.partialorder %v536, 0.0
      %v635 = vand.u32 %v536, 2147483648
      %v636 = vsel %vm634, %v635, %v633
      %v637 = vrsqrt.pop %v537
      %v638 = vmul.f32 %v537, %v637
      %vm639 = vcmp.eq.f32.partialorder %v537, inf
      %v640 = vsel %vm639, %v537, %v638
      %vm641 = vcmp.eq.f32.partialorder %v537, 0.0
      %v642 = vand.u32 %v537, 2147483648
      %v643 = vsel %vm641, %v642, %v640
      %v644 = vrsqrt.pop %v538
      %v645 = vmul.f32 %v538, %v644
      %vm646 = vcmp.eq.f32.partialorder %v538, inf
      %v647 = vsel %vm646, %v538, %v645
      %vm648 = vcmp.eq.f32.partialorder %v538, 0.0
      %v649 = vand.u32 %v538, 2147483648
      %v650 = vsel %vm648, %v649, %v647
      %v651 = vadd.f32 %v545, 1e-06
      %v652 = vadd.f32 %v552, 1e-06
      %v653 = vadd.f32 %v559, 1e-06
      %v654 = vadd.f32 %v566, 1e-06
      %v655 = vadd.f32 %v573, 1e-06
      %v656 = vadd.f32 %v580, 1e-06
      %v657 = vadd.f32 %v587, 1e-06
      %v658 = vadd.f32 %v594, 1e-06
      %v659 = vadd.f32 %v601, 1e-06
      %v660 = vadd.f32 %v608, 1e-06
      %v661 = vadd.f32 %v615, 1e-06
      %v662 = vadd.f32 %v622, 1e-06
      %v663 = vadd.f32 %v629, 1e-06
      %v664 = vadd.f32 %v636, 1e-06
      %v665 = vadd.f32 %v643, 1e-06
      %v666 = vadd.f32 %v650, 1e-06
      %v667 = vrcp.pop %v651
      %v668 = vmul.f32 1.0, %v667
      %v669 = vrcp.pop %v652
      %v670 = vmul.f32 1.0, %v669
      %v671 = vrcp.pop %v653
      %v672 = vmul.f32 1.0, %v671
      %v673 = vrcp.pop %v654
      %v674 = vmul.f32 1.0, %v673
      %v675 = vrcp.pop %v655
      %v676 = vmul.f32 1.0, %v675
      %v677 = vrcp.pop %v656
      %v678 = vmul.f32 1.0, %v677
      %v679 = vrcp.pop %v657
      %v680 = vmul.f32 1.0, %v679
      %v681 = vrcp.pop %v658
      %v682 = vmul.f32 1.0, %v681
      %v683 = vrcp.pop %v659
      %v684 = vmul.f32 1.0, %v683
      %v685 = vrcp.pop %v660
      %v686 = vmul.f32 1.0, %v685
      %v687 = vrcp.pop %v661
      %v688 = vmul.f32 1.0, %v687
      %v689 = vrcp.pop %v662
      %v690 = vmul.f32 1.0, %v689
      %v691 = vrcp.pop %v663
      %v692 = vmul.f32 1.0, %v691
      %v693 = vrcp.pop %v664
      %v694 = vmul.f32 1.0, %v693
      %v695 = vrcp.pop %v665
      %v696 = vmul.f32 1.0, %v695
      %v697 = vrcp.pop %v666
      %v698 = vmul.f32 1.0, %v697
      %v699 = vmul.f32 %v459, %v668
      %v700 = vmul.f32 %v460, %v670
      %v701 = vmul.f32 %v461, %v672
      %v702 = vmul.f32 %v462, %v674
      %v703 = vmul.f32 %v463, %v676
      %v704 = vmul.f32 %v464, %v678
      %v705 = vmul.f32 %v465, %v680
      %v706 = vmul.f32 %v466, %v682
      %v707 = vmul.f32 %v467, %v684
      %v708 = vmul.f32 %v468, %v686
      %v709 = vmul.f32 %v469, %v688
      %v710 = vmul.f32 %v470, %v690
      %v711 = vmul.f32 %v471, %v692
      %v712 = vmul.f32 %v472, %v694
      %v713 = vmul.f32 %v473, %v696
      %v714 = vmul.f32 %v474, %v698
      %v716 = vlaneseq
      %v717 = vshrl.u32 %v716, 7
      %v718 = vsub.s32 0, %v717
      %v719 = vrot.slane %v409, %v718
      %v721 = vmul.f32 %v719, %v699
      %v722 = vmul.f32 %v719, %v700
      %v723 = vmul.f32 %v719, %v701
      %v724 = vmul.f32 %v719, %v702
      %v725 = vmul.f32 %v719, %v703
      %v726 = vmul.f32 %v719, %v704
      %v727 = vmul.f32 %v719, %v705
      %v728 = vmul.f32 %v719, %v706
      %v729 = vmul.f32 %v719, %v707
      %v730 = vmul.f32 %v719, %v708
      %v731 = vmul.f32 %v719, %v709
      %v732 = vmul.f32 %v719, %v710
      %v733 = vmul.f32 %v719, %v711
      %v734 = vmul.f32 %v719, %v712
      %v735 = vmul.f32 %v719, %v713
      %v736 = vmul.f32 %v719, %v714
      %v738 = vlaneseq
      %v739 = vshrl.u32 %v738, 7
      %v740 = vsub.s32 0, %v739
      %v741 = vrot.slane %v410, %v740
      %v743 = vadd.f32 %v721, %v741
      %v744 = vadd.f32 %v722, %v741
      %v745 = vadd.f32 %v723, %v741
      %v746 = vadd.f32 %v724, %v741
      %v747 = vadd.f32 %v725, %v741
      %v748 = vadd.f32 %v726, %v741
      %v749 = vadd.f32 %v727, %v741
      %v750 = vadd.f32 %v728, %v741
      %v751 = vadd.f32 %v729, %v741
      %v752 = vadd.f32 %v730, %v741
      %v753 = vadd.f32 %v731, %v741
      %v754 = vadd.f32 %v732, %v741
      %v755 = vadd.f32 %v733, %v741
      %v756 = vadd.f32 %v734, %v741
      %v757 = vadd.f32 %v735, %v741
      %v758 = vadd.f32 %v736, %v741
      %v759 = vpack.c.bf16 %v744, %v743
      %v760 = vpack.c.bf16 %v746, %v745
      %v761 = vpack.c.bf16 %v748, %v747
      %v762 = vpack.c.bf16 %v750, %v749
      %v763 = vpack.c.bf16 %v752, %v751
      %v764 = vpack.c.bf16 %v754, %v753
      %v765 = vpack.c.bf16 %v756, %v755
      %v766 = vpack.c.bf16 %v758, %v757
      %v767 = vld [vmem:[%s340] sm:$0xf]
      %v768 = vld [vmem:[%s340 + $0x4] sm:$0xf]
      %v769 = vld [vmem:[%s340 + $0x8] sm:$0xf]
      %v770 = vld [vmem:[%s340 + $0xc] sm:$0xf]
      %v771 = vld [vmem:[%s340 + $0x10] sm:$0xf]
      %v772 = vld [vmem:[%s340 + $0x14] sm:$0xf]
      %v773 = vld [vmem:[%s340 + $0x18] sm:$0xf]
      %v774 = vld [vmem:[%s340 + $0x1c] sm:$0xf]
      %v775 = vld [vmem:[%s340 + $0x20] sm:$0xf]
      %v776 = vld [vmem:[%s340 + $0x24] sm:$0xf]
      %v777 = vld [vmem:[%s340 + $0x28] sm:$0xf]
      %v778 = vld [vmem:[%s340 + $0x2c] sm:$0xf]
      %v779 = vld [vmem:[%s340 + $0x30] sm:$0xf]
      %v780 = vld [vmem:[%s340 + $0x34] sm:$0xf]
      %v781 = vld [vmem:[%s340 + $0x38] sm:$0xf]
      %v782 = vld [vmem:[%s340 + $0x3c] sm:$0xf]
      %v783 = vld [vmem:[%s343] sm:$0x1]
      %v785 = vlaneseq
      %v786 = vshrl.u32 %v785, 7
      %v787 = vsub.s32 0, %v786
      %v788 = vrot.slane %v783, %v787
      %v806 = vunpack.c.l.b16 %v767
      %v807 = vunpack.c.l.b16 %v768
      %v808 = vunpack.c.l.b16 %v769
      %v809 = vunpack.c.l.b16 %v770
      %v810 = vunpack.c.l.b16 %v771
      %v811 = vunpack.c.l.b16 %v772
      %v812 = vunpack.c.l.b16 %v773
      %v813 = vunpack.c.l.b16 %v774
      %v814 = vunpack.c.l.b16 %v775
      %v815 = vunpack.c.l.b16 %v776
      %v816 = vunpack.c.l.b16 %v777
      %v817 = vunpack.c.l.b16 %v778
      %v818 = vunpack.c.l.b16 %v779
      %v819 = vunpack.c.l.b16 %v780
      %v820 = vunpack.c.l.b16 %v781
      %v821 = vunpack.c.l.b16 %v782
      %v822 = vpack.c.b16 %v807, %v806
      %v823 = vpack.c.b16 %v809, %v808
      %v824 = vpack.c.b16 %v811, %v810
      %v825 = vpack.c.b16 %v813, %v812
      %v826 = vpack.c.b16 %v815, %v814
      %v827 = vpack.c.b16 %v817, %v816
      %v828 = vpack.c.b16 %v819, %v818
      %v829 = vpack.c.b16 %v821, %v820
      %838 = vmatprep.subr.bf16.mxu0 0
      %839 = vmatpush1.bf16.msra.mxu0 %v829
      %840 = vmatprep.subr.bf16.mxu0 0
      %841 = vmatpush1.bf16.msra.mxu0 %v828
      %842 = vmatprep.subr.bf16.mxu0 0
      %843 = vmatpush1.bf16.msra.mxu0 %v827
      %844 = vmatprep.subr.bf16.mxu0 0
      %845 = vmatpush1.bf16.msra.mxu0 %v826
      %846 = vmatprep.subr.bf16.mxu0 0
      %847 = vmatpush1.bf16.msra.mxu0 %v825
      %848 = vmatprep.subr.bf16.mxu0 0
      %849 = vmatpush1.bf16.msra.mxu0 %v824
      %850 = vmatprep.subr.bf16.mxu0 0
      %851 = vmatpush1.bf16.msra.mxu0 %v823
      %852 = vmatprep.subr.bf16.mxu0 0
      %853 = vmatpush1.bf16.msra.mxu0 %v822
      %854 = vmatprep.subr.bf16.mxu0 0
      %855 = vmatpush2.bf16.msra.mxu0 0
      %856 = vmatprep.subr.bf16.mxu0 0
      %857 = vmatpush2.bf16.msra.mxu0 0
      %858 = vmatprep.subr.bf16.mxu0 0
      %859 = vmatpush2.bf16.msra.mxu0 0
      %860 = vmatprep.subr.bf16.mxu0 0
      %861 = vmatpush2.bf16.msra.mxu0 0
      %862 = vmatprep.subr.bf16.mxu0 0
      %863 = vmatpush2.bf16.msra.mxu0 0
      %864 = vmatprep.subr.bf16.mxu0 0
      %865 = vmatpush2.bf16.msra.mxu0 0
      %866 = vmatprep.subr.bf16.mxu0 0
      %867 = vmatpush2.bf16.msra.mxu0 0
      %868 = vmatprep.subr.bf16.mxu0 0
      %869 = vmatpush2.bf16.msra.mxu0 0
      %870 = vmatprep.mubr.bf16.mxu0 0
      %871 = vmatmul.mubr.bf16.gmra.mxu0 %v759
      %v872 = vpop.f32.mrf.mxu0
      %v873 = vadd.f32 %v788, %v872
      %v874 = vpop.f32.mrf.mxu0
      %v875 = vpop.f32.mrf.mxu0
      %v876 = vadd.f32 %v788, %v875
      %v877 = vpop.f32.mrf.mxu0
      %878 = vmatprep.mubr.bf16.mxu0 0
      %879 = vmatmul.mubr.bf16.gmra.mxu0 %v760
      %v880 = vpop.f32.mrf.mxu0
      %v881 = vadd.f32 %v788, %v880
      %v882 = vpop.f32.mrf.mxu0
      %v883 = vpop.f32.mrf.mxu0
      %v884 = vadd.f32 %v788, %v883
      %v885 = vpop.f32.mrf.mxu0
      %886 = vmatprep.mubr.bf16.mxu0 0
      %887 = vmatmul.mubr.bf16.gmra.mxu0 %v761
      %v888 = vpop.f32.mrf.mxu0
      %v889 = vadd.f32 %v788, %v888
      %v890 = vpop.f32.mrf.mxu0
      %v891 = vpop.f32.mrf.mxu0
      %v892 = vadd.f32 %v788, %v891
      %v893 = vpop.f32.mrf.mxu0
      %894 = vmatprep.mubr.bf16.mxu0 0
      %895 = vmatmul.mubr.bf16.gmra.mxu0 %v762
      %v896 = vpop.f32.mrf.mxu0
      %v897 = vadd.f32 %v788, %v896
      %v898 = vpop.f32.mrf.mxu0
      %v899 = vpop.f32.mrf.mxu0
      %v900 = vadd.f32 %v788, %v899
      %v901 = vpop.f32.mrf.mxu0
      %902 = vmatprep.mubr.bf16.mxu0 0
      %903 = vmatmul.mubr.bf16.gmra.mxu0 %v763
      %v904 = vpop.f32.mrf.mxu0
      %v905 = vadd.f32 %v788, %v904
      %v906 = vpop.f32.mrf.mxu0
      %v907 = vpop.f32.mrf.mxu0
      %v908 = vadd.f32 %v788, %v907
      %v909 = vpop.f32.mrf.mxu0
      %910 = vmatprep.mubr.bf16.mxu0 0
      %911 = vmatmul.mubr.bf16.gmra.mxu0 %v764
      %v912 = vpop.f32.mrf.mxu0
      %v913 = vadd.f32 %v788, %v912
      %v914 = vpop.f32.mrf.mxu0
      %v915 = vpop.f32.mrf.mxu0
      %v916 = vadd.f32 %v788, %v915
      %v917 = vpop.f32.mrf.mxu0
      %918 = vmatprep.mubr.bf16.mxu0 0
      %919 = vmatmul.mubr.bf16.gmra.mxu0 %v765
      %v920 = vpop.f32.mrf.mxu0
      %v921 = vadd.f32 %v788, %v920
      %v922 = vpop.f32.mrf.mxu0
      %v923 = vpop.f32.mrf.mxu0
      %v924 = vadd.f32 %v788, %v923
      %v925 = vpop.f32.mrf.mxu0
      %926 = vmatprep.mubr.bf16.mxu0 0
      %927 = vmatmul.mubr.bf16.gmra.mxu0 %v766
      %v928 = vpop.f32.mrf.mxu0
      %v929 = vadd.f32 %v788, %v928
      %v930 = vpop.f32.mrf.mxu0
      %v931 = vpop.f32.mrf.mxu0
      %v932 = vadd.f32 %v788, %v931
      %v933 = vpop.f32.mrf.mxu0
      %934 = vdwg.mxu0
      %v935 = vadd.f32 %v393, %v873
      %v936 = vadd.f32 %v394, %v876
      %v937 = vadd.f32 %v395, %v881
      %v938 = vadd.f32 %v396, %v884
      %v939 = vadd.f32 %v397, %v889
      %v940 = vadd.f32 %v398, %v892
      %v941 = vadd.f32 %v399, %v897
      %v942 = vadd.f32 %v400, %v900
      %v943 = vadd.f32 %v401, %v905
      %v944 = vadd.f32 %v402, %v908
      %v945 = vadd.f32 %v403, %v913
      %v946 = vadd.f32 %v404, %v916
      %v947 = vadd.f32 %v405, %v921
      %v948 = vadd.f32 %v406, %v924
      %v949 = vadd.f32 %v407, %v929
      %v950 = vadd.f32 %v408, %v932
      %951 = vst [vmem:[#allocation2] sm:$0xff] %v935
      %952 = vst [vmem:[#allocation2 + $0x8] sm:$0xff] %v936
      %953 = vst [vmem:[#allocation2 + $0x10] sm:$0xff] %v937
      %954 = vst [vmem:[#allocation2 + $0x18] sm:$0xff] %v938
      %955 = vst [vmem:[#allocation2 + $0x20] sm:$0xff] %v939
      %956 = vst [vmem:[#allocation2 + $0x28] sm:$0xff] %v940
      %957 = vst [vmem:[#allocation2 + $0x30] sm:$0xff] %v941
      %958 = vst [vmem:[#allocation2 + $0x38] sm:$0xff] %v942
      %959 = vst [vmem:[#allocation2 + $0x40] sm:$0xff] %v943
      %960 = vst [vmem:[#allocation2 + $0x48] sm:$0xff] %v944
      %961 = vst [vmem:[#allocation2 + $0x50] sm:$0xff] %v945
      %962 = vst [vmem:[#allocation2 + $0x58] sm:$0xff] %v946
      %963 = vst [vmem:[#allocation2 + $0x60] sm:$0xff] %v947
      %964 = vst [vmem:[#allocation2 + $0x68] sm:$0xff] %v948
      %965 = vst [vmem:[#allocation2 + $0x70] sm:$0xff] %v949
      %966 = vst [vmem:[#allocation2 + $0x78] sm:$0xff] %v950
      %p967 = scmp.eq.s32.totalorder %s23, 1
      // Predicated region
      $region53: #{encoder_forward.1} parent=47 // pred_check
        %p968 = pneg %p967
      $region54: #{encoder_forward.1} parent=47 // pred_check_branch
        %970 = sbr.rel (%p968) target = $region56
      $region55: #{encoder_forward.1} parent=47 // pred_region
        %v971 = vld [vmem:[%s5] sm:$0x1]
        %v972 = vld [vmem:[%s6] sm:$0x1]
        %973 = vadd.xlane.f32.xlu0 %v935
        %v974 = vpop.xlane.xlu0 %973
        %975 = vadd.xlane.f32.xlu0 %v936
        %v976 = vpop.xlane.xlu0 %975
        %977 = vadd.xlane.f32.xlu0 %v937
        %v978 = vpop.xlane.xlu0 %977
        %979 = vadd.xlane.f32.xlu0 %v938
        %v980 = vpop.xlane.xlu0 %979
        %981 = vadd.xlane.f32.xlu0 %v939
        %v982 = vpop.xlane.xlu0 %981
        %983 = vadd.xlane.f32.xlu0 %v940
        %v984 = vpop.xlane.xlu0 %983
        %985 = vadd.xlane.f32.xlu0 %v941
        %v986 = vpop.xlane.xlu0 %985
        %987 = vadd.xlane.f32.xlu0 %v942
        %v988 = vpop.xlane.xlu0 %987
        %989 = vadd.xlane.f32.xlu0 %v943
        %v990 = vpop.xlane.xlu0 %989
        %991 = vadd.xlane.f32.xlu0 %v944
        %v992 = vpop.xlane.xlu0 %991
        %993 = vadd.xlane.f32.xlu0 %v945
        %v994 = vpop.xlane.xlu0 %993
        %995 = vadd.xlane.f32.xlu0 %v946
        %v996 = vpop.xlane.xlu0 %995
        %997 = vadd.xlane.f32.xlu0 %v947
        %v998 = vpop.xlane.xlu0 %997
        %999 = vadd.xlane.f32.xlu0 %v948
        %v1000 = vpop.xlane.xlu0 %999
        %1001 = vadd.xlane.f32.xlu0 %v949
        %v1002 = vpop.xlane.xlu0 %1001
        %1003 = vadd.xlane.f32.xlu0 %v950
        %v1004 = vpop.xlane.xlu0 %1003
        %v1005 = vmul.f32 %v974, 0.0078125
        %v1006 = vmul.f32 %v976, 0.0078125
        %v1007 = vmul.f32 %v978, 0.0078125
        %v1008 = vmul.f32 %v980, 0.0078125
        %v1009 = vmul.f32 %v982, 0.0078125
        %v1010 = vmul.f32 %v984, 0.0078125
        %v1011 = vmul.f32 %v986, 0.0078125
        %v1012 = vmul.f32 %v988, 0.0078125
        %v1013 = vmul.f32 %v990, 0.0078125
        %v1014 = vmul.f32 %v992, 0.0078125
        %v1015 = vmul.f32 %v994, 0.0078125
        %v1016 = vmul.f32 %v996, 0.0078125
        %v1017 = vmul.f32 %v998, 0.0078125
        %v1018 = vmul.f32 %v1000, 0.0078125
        %v1019 = vmul.f32 %v1002, 0.0078125
        %v1020 = vmul.f32 %v1004, 0.0078125
        %v1021 = vsub.f32 %v935, %v1005
        %v1022 = vsub.f32 %v936, %v1006
        %v1023 = vsub.f32 %v937, %v1007
        %v1024 = vsub.f32 %v938, %v1008
        %v1025 = vsub.f32 %v939, %v1009
        %v1026 = vsub.f32 %v940, %v1010
        %v1027 = vsub.f32 %v941, %v1011
        %v1028 = vsub.f32 %v942, %v1012
        %v1029 = vsub.f32 %v943, %v1013
        %v1030 = vsub.f32 %v944, %v1014
        %v1031 = vsub.f32 %v945, %v1015
        %v1032 = vsub.f32 %v946, %v1016
        %v1033 = vsub.f32 %v947, %v1017
        %v1034 = vsub.f32 %v948, %v1018
        %v1035 = vsub.f32 %v949, %v1019
        %v1036 = vsub.f32 %v950, %v1020
        %v1037 = vmul.f32 %v1021, %v1021
        %v1038 = vmul.f32 %v1022, %v1022
        %v1039 = vmul.f32 %v1023, %v1023
        %v1040 = vmul.f32 %v1024, %v1024
        %v1041 = vmul.f32 %v1025, %v1025
        %v1042 = vmul.f32 %v1026, %v1026
        %v1043 = vmul.f32 %v1027, %v1027
        %v1044 = vmul.f32 %v1028, %v1028
        %v1045 = vmul.f32 %v1029, %v1029
        %v1046 = vmul.f32 %v1030, %v1030
        %v1047 = vmul.f32 %v1031, %v1031
        %v1048 = vmul.f32 %v1032, %v1032
        %v1049 = vmul.f32 %v1033, %v1033
        %v1050 = vmul.f32 %v1034, %v1034
        %v1051 = vmul.f32 %v1035, %v1035
        %v1052 = vmul.f32 %v1036, %v1036
        %1053 = vadd.xlane.f32.xlu0 %v1037
        %v1054 = vpop.xlane.xlu0 %1053
        %1055 = vadd.xlane.f32.xlu0 %v1038
        %v1056 = vpop.xlane.xlu0 %1055
        %1057 = vadd.xlane.f32.xlu0 %v1039
        %v1058 = vpop.xlane.xlu0 %1057
        %1059 = vadd.xlane.f32.xlu0 %v1040
        %v1060 = vpop.xlane.xlu0 %1059
        %1061 = vadd.xlane.f32.xlu0 %v1041
        %v1062 = vpop.xlane.xlu0 %1061
        %1063 = vadd.xlane.f32.xlu0 %v1042
        %v1064 = vpop.xlane.xlu0 %1063
        %1065 = vadd.xlane.f32.xlu0 %v1043
        %v1066 = vpop.xlane.xlu0 %1065
        %1067 = vadd.xlane.f32.xlu0 %v1044
        %v1068 = vpop.xlane.xlu0 %1067
        %1069 = vadd.xlane.f32.xlu0 %v1045
        %v1070 = vpop.xlane.xlu0 %1069
        %1071 = vadd.xlane.f32.xlu0 %v1046
        %v1072 = vpop.xlane.xlu0 %1071
        %1073 = vadd.xlane.f32.xlu0 %v1047
        %v1074 = vpop.xlane.xlu0 %1073
        %1075 = vadd.xlane.f32.xlu0 %v1048
        %v1076 = vpop.xlane.xlu0 %1075
        %1077 = vadd.xlane.f32.xlu0 %v1049
        %v1078 = vpop.xlane.xlu0 %1077
        %1079 = vadd.xlane.f32.xlu0 %v1050
        %v1080 = vpop.xlane.xlu0 %1079
        %1081 = vadd.xlane.f32.xlu0 %v1051
        %v1082 = vpop.xlane.xlu0 %1081
        %1083 = vadd.xlane.f32.xlu0 %v1052
        %v1084 = vpop.xlane.xlu0 %1083
        %v1085 = vmul.f32 %v1054, 0.007874016
        %v1086 = vmul.f32 %v1056, 0.007874016
        %v1087 = vmul.f32 %v1058, 0.007874016
        %v1088 = vmul.f32 %v1060, 0.007874016
        %v1089 = vmul.f32 %v1062, 0.007874016
        %v1090 = vmul.f32 %v1064, 0.007874016
        %v1091 = vmul.f32 %v1066, 0.007874016
        %v1092 = vmul.f32 %v1068, 0.007874016
        %v1093 = vmul.f32 %v1070, 0.007874016
        %v1094 = vmul.f32 %v1072, 0.007874016
        %v1095 = vmul.f32 %v1074, 0.007874016
        %v1096 = vmul.f32 %v1076, 0.007874016
        %v1097 = vmul.f32 %v1078, 0.007874016
        %v1098 = vmul.f32 %v1080, 0.007874016
        %v1099 = vmul.f32 %v1082, 0.007874016
        %v1100 = vmul.f32 %v1084, 0.007874016
        %v1101 = vrsqrt.pop %v1085
        %v1102 = vmul.f32 %v1085, %v1101
        %vm1103 = vcmp.eq.f32.partialorder %v1085, inf
        %v1104 = vsel %vm1103, %v1085, %v1102
        %vm1105 = vcmp.eq.f32.partialorder %v1085, 0.0
        %v1106 = vand.u32 %v1085, 2147483648
        %v1107 = vsel %vm1105, %v1106, %v1104
        %v1108 = vrsqrt.pop %v1086
        %v1109 = vmul.f32 %v1086, %v1108
        %vm1110 = vcmp.eq.f32.partialorder %v1086, inf
        %v1111 = vsel %vm1110, %v1086, %v1109
        %vm1112 = vcmp.eq.f32.partialorder %v1086, 0.0
        %v1113 = vand.u32 %v1086, 2147483648
        %v1114 = vsel %vm1112, %v1113, %v1111
        %v1115 = vrsqrt.pop %v1087
        %v1116 = vmul.f32 %v1087, %v1115
        %vm1117 = vcmp.eq.f32.partialorder %v1087, inf
        %v1118 = vsel %vm1117, %v1087, %v1116
        %vm1119 = vcmp.eq.f32.partialorder %v1087, 0.0
        %v1120 = vand.u32 %v1087, 2147483648
        %v1121 = vsel %vm1119, %v1120, %v1118
        %v1122 = vrsqrt.pop %v1088
        %v1123 = vmul.f32 %v1088, %v1122
        %vm1124 = vcmp.eq.f32.partialorder %v1088, inf
        %v1125 = vsel %vm1124, %v1088, %v1123
        %vm1126 = vcmp.eq.f32.partialorder %v1088, 0.0
        %v1127 = vand.u32 %v1088, 2147483648
        %v1128 = vsel %vm1126, %v1127, %v1125
        %v1129 = vrsqrt.pop %v1089
        %v1130 = vmul.f32 %v1089, %v1129
        %vm1131 = vcmp.eq.f32.partialorder %v1089, inf
        %v1132 = vsel %vm1131, %v1089, %v1130
        %vm1133 = vcmp.eq.f32.partialorder %v1089, 0.0
        %v1134 = vand.u32 %v1089, 2147483648
        %v1135 = vsel %vm1133, %v1134, %v1132
        %v1136 = vrsqrt.pop %v1090
        %v1137 = vmul.f32 %v1090, %v1136
        %vm1138 = vcmp.eq.f32.partialorder %v1090, inf
        %v1139 = vsel %vm1138, %v1090, %v1137
        %vm1140 = vcmp.eq.f32.partialorder %v1090, 0.0
        %v1141 = vand.u32 %v1090, 2147483648
        %v1142 = vsel %vm1140, %v1141, %v1139
        %v1143 = vrsqrt.pop %v1091
        %v1144 = vmul.f32 %v1091, %v1143
        %vm1145 = vcmp.eq.f32.partialorder %v1091, inf
        %v1146 = vsel %vm1145, %v1091, %v1144
        %vm1147 = vcmp.eq.f32.partialorder %v1091, 0.0
        %v1148 = vand.u32 %v1091, 2147483648
        %v1149 = vsel %vm1147, %v1148, %v1146
        %v1150 = vrsqrt.pop %v1092
        %v1151 = vmul.f32 %v1092, %v1150
        %vm1152 = vcmp.eq.f32.partialorder %v1092, inf
        %v1153 = vsel %vm1152, %v1092, %v1151
        %vm1154 = vcmp.eq.f32.partialorder %v1092, 0.0
        %v1155 = vand.u32 %v1092, 2147483648
        %v1156 = vsel %vm1154, %v1155, %v1153
        %v1157 = vrsqrt.pop %v1093
        %v1158 = vmul.f32 %v1093, %v1157
        %vm1159 = vcmp.eq.f32.partialorder %v1093, inf
        %v1160 = vsel %vm1159, %v1093, %v1158
        %vm1161 = vcmp.eq.f32.partialorder %v1093, 0.0
        %v1162 = vand.u32 %v1093, 2147483648
        %v1163 = vsel %vm1161, %v1162, %v1160
        %v1164 = vrsqrt.pop %v1094
        %v1165 = vmul.f32 %v1094, %v1164
        %vm1166 = vcmp.eq.f32.partialorder %v1094, inf
        %v1167 = vsel %vm1166, %v1094, %v1165
        %vm1168 = vcmp.eq.f32.partialorder %v1094, 0.0
        %v1169 = vand.u32 %v1094, 2147483648
        %v1170 = vsel %vm1168, %v1169, %v1167
        %v1171 = vrsqrt.pop %v1095
        %v1172 = vmul.f32 %v1095, %v1171
        %vm1173 = vcmp.eq.f32.partialorder %v1095, inf
        %v1174 = vsel %vm1173, %v1095, %v1172
        %vm1175 = vcmp.eq.f32.partialorder %v1095, 0.0
        %v1176 = vand.u32 %v1095, 2147483648
        %v1177 = vsel %vm1175, %v1176, %v1174
        %v1178 = vrsqrt.pop %v1096
        %v1179 = vmul.f32 %v1096, %v1178
        %vm1180 = vcmp.eq.f32.partialorder %v1096, inf
        %v1181 = vsel %vm1180, %v1096, %v1179
        %vm1182 = vcmp.eq.f32.partialorder %v1096, 0.0
        %v1183 = vand.u32 %v1096, 2147483648
        %v1184 = vsel %vm1182, %v1183, %v1181
        %v1185 = vrsqrt.pop %v1097
        %v1186 = vmul.f32 %v1097, %v1185
        %vm1187 = vcmp.eq.f32.partialorder %v1097, inf
        %v1188 = vsel %vm1187, %v1097, %v1186
        %vm1189 = vcmp.eq.f32.partialorder %v1097, 0.0
        %v1190 = vand.u32 %v1097, 2147483648
        %v1191 = vsel %vm1189, %v1190, %v1188
        %v1192 = vrsqrt.pop %v1098
        %v1193 = vmul.f32 %v1098, %v1192
        %vm1194 = vcmp.eq.f32.partialorder %v1098, inf
        %v1195 = vsel %vm1194, %v1098, %v1193
        %vm1196 = vcmp.eq.f32.partialorder %v1098, 0.0
        %v1197 = vand.u32 %v1098, 2147483648
        %v1198 = vsel %vm1196, %v1197, %v1195
        %v1199 = vrsqrt.pop %v1099
        %v1200 = vmul.f32 %v1099, %v1199
        %vm1201 = vcmp.eq.f32.partialorder %v1099, inf
        %v1202 = vsel %vm1201, %v1099, %v1200
        %vm1203 = vcmp.eq.f32.partialorder %v1099, 0.0
        %v1204 = vand.u32 %v1099, 2147483648
        %v1205 = vsel %vm1203, %v1204, %v1202
        %v1206 = vrsqrt.pop %v1100
        %v1207 = vmul.f32 %v1100, %v1206
        %vm1208 = vcmp.eq.f32.partialorder %v1100, inf
        %v1209 = vsel %vm1208, %v1100, %v1207
        %vm1210 = vcmp.eq.f32.partialorder %v1100, 0.0
        %v1211 = vand.u32 %v1100, 2147483648
        %v1212 = vsel %vm1210, %v1211, %v1209
        %v1213 = vadd.f32 %v1107, 1e-06
        %v1214 = vadd.f32 %v1114, 1e-06
        %v1215 = vadd.f32 %v1121, 1e-06
        %v1216 = vadd.f32 %v1128, 1e-06
        %v1217 = vadd.f32 %v1135, 1e-06
        %v1218 = vadd.f32 %v1142, 1e-06
        %v1219 = vadd.f32 %v1149, 1e-06
        %v1220 = vadd.f32 %v1156, 1e-06
        %v1221 = vadd.f32 %v1163, 1e-06
        %v1222 = vadd.f32 %v1170, 1e-06
        %v1223 = vadd.f32 %v1177, 1e-06
        %v1224 = vadd.f32 %v1184, 1e-06
        %v1225 = vadd.f32 %v1191, 1e-06
        %v1226 = vadd.f32 %v1198, 1e-06
        %v1227 = vadd.f32 %v1205, 1e-06
        %v1228 = vadd.f32 %v1212, 1e-06
        %v1229 = vrcp.pop %v1213
        %v1230 = vmul.f32 1.0, %v1229
        %v1231 = vrcp.pop %v1214
        %v1232 = vmul.f32 1.0, %v1231
        %v1233 = vrcp.pop %v1215
        %v1234 = vmul.f32 1.0, %v1233
        %v1235 = vrcp.pop %v1216
        %v1236 = vmul.f32 1.0, %v1235
        %v1237 = vrcp.pop %v1217
        %v1238 = vmul.f32 1.0, %v1237
        %v1239 = vrcp.pop %v1218
        %v1240 = vmul.f32 1.0, %v1239
        %v1241 = vrcp.pop %v1219
        %v1242 = vmul.f32 1.0, %v1241
        %v1243 = vrcp.pop %v1220
        %v1244 = vmul.f32 1.0, %v1243
        %v1245 = vrcp.pop %v1221
        %v1246 = vmul.f32 1.0, %v1245
        %v1247 = vrcp.pop %v1222
        %v1248 = vmul.f32 1.0, %v1247
        %v1249 = vrcp.pop %v1223
        %v1250 = vmul.f32 1.0, %v1249
        %v1251 = vrcp.pop %v1224
        %v1252 = vmul.f32 1.0, %v1251
        %v1253 = vrcp.pop %v1225
        %v1254 = vmul.f32 1.0, %v1253
        %v1255 = vrcp.pop %v1226
        %v1256 = vmul.f32 1.0, %v1255
        %v1257 = vrcp.pop %v1227
        %v1258 = vmul.f32 1.0, %v1257
        %v1259 = vrcp.pop %v1228
        %v1260 = vmul.f32 1.0, %v1259
        %v1261 = vmul.f32 %v1021, %v1230
        %v1262 = vmul.f32 %v1022, %v1232
        %v1263 = vmul.f32 %v1023, %v1234
        %v1264 = vmul.f32 %v1024, %v1236
        %v1265 = vmul.f32 %v1025, %v1238
        %v1266 = vmul.f32 %v1026, %v1240
        %v1267 = vmul.f32 %v1027, %v1242
        %v1268 = vmul.f32 %v1028, %v1244
        %v1269 = vmul.f32 %v1029, %v1246
        %v1270 = vmul.f32 %v1030, %v1248
        %v1271 = vmul.f32 %v1031, %v1250
        %v1272 = vmul.f32 %v1032, %v1252
        %v1273 = vmul.f32 %v1033, %v1254
        %v1274 = vmul.f32 %v1034, %v1256
        %v1275 = vmul.f32 %v1035, %v1258
        %v1276 = vmul.f32 %v1036, %v1260
        %v1278 = vlaneseq
        %v1279 = vshrl.u32 %v1278, 7
        %v1280 = vsub.s32 0, %v1279
        %v1281 = vrot.slane %v971, %v1280
        %v1283 = vmul.f32 %v1281, %v1261
        %v1284 = vmul.f32 %v1281, %v1262
        %v1285 = vmul.f32 %v1281, %v1263
        %v1286 = vmul.f32 %v1281, %v1264
        %v1287 = vmul.f32 %v1281, %v1265
        %v1288 = vmul.f32 %v1281, %v1266
        %v1289 = vmul.f32 %v1281, %v1267
        %v1290 = vmul.f32 %v1281, %v1268
        %v1291 = vmul.f32 %v1281, %v1269
        %v1292 = vmul.f32 %v1281, %v1270
        %v1293 = vmul.f32 %v1281, %v1271
        %v1294 = vmul.f32 %v1281, %v1272
        %v1295 = vmul.f32 %v1281, %v1273
        %v1296 = vmul.f32 %v1281, %v1274
        %v1297 = vmul.f32 %v1281, %v1275
        %v1298 = vmul.f32 %v1281, %v1276
        %v1300 = vlaneseq
        %v1301 = vshrl.u32 %v1300, 7
        %v1302 = vsub.s32 0, %v1301
        %v1303 = vrot.slane %v972, %v1302
        %v1305 = vadd.f32 %v1283, %v1303
        %v1306 = vadd.f32 %v1284, %v1303
        %v1307 = vadd.f32 %v1285, %v1303
        %v1308 = vadd.f32 %v1286, %v1303
        %v1309 = vadd.f32 %v1287, %v1303
        %v1310 = vadd.f32 %v1288, %v1303
        %v1311 = vadd.f32 %v1289, %v1303
        %v1312 = vadd.f32 %v1290, %v1303
        %v1313 = vadd.f32 %v1291, %v1303
        %v1314 = vadd.f32 %v1292, %v1303
        %v1315 = vadd.f32 %v1293, %v1303
        %v1316 = vadd.f32 %v1294, %v1303
        %v1317 = vadd.f32 %v1295, %v1303
        %v1318 = vadd.f32 %v1296, %v1303
        %v1319 = vadd.f32 %v1297, %v1303
        %v1320 = vadd.f32 %v1298, %v1303
        %1321 = vst [vmem:[%s354] sm:$0xff] %v1305
        %1322 = vst [vmem:[%s354 + $0x8] sm:$0xff] %v1306
        %1323 = vst [vmem:[%s354 + $0x10] sm:$0xff] %v1307
        %1324 = vst [vmem:[%s354 + $0x18] sm:$0xff] %v1308
        %1325 = vst [vmem:[%s354 + $0x20] sm:$0xff] %v1309
        %1326 = vst [vmem:[%s354 + $0x28] sm:$0xff] %v1310
        %1327 = vst [vmem:[%s354 + $0x30] sm:$0xff] %v1311
        %1328 = vst [vmem:[%s354 + $0x38] sm:$0xff] %v1312
        %1329 = vst [vmem:[%s354 + $0x40] sm:$0xff] %v1313
        %1330 = vst [vmem:[%s354 + $0x48] sm:$0xff] %v1314
        %1331 = vst [vmem:[%s354 + $0x50] sm:$0xff] %v1315
        %1332 = vst [vmem:[%s354 + $0x58] sm:$0xff] %v1316
        %1333 = vst [vmem:[%s354 + $0x60] sm:$0xff] %v1317
        %1334 = vst [vmem:[%s354 + $0x68] sm:$0xff] %v1318
        %1335 = vst [vmem:[%s354 + $0x70] sm:$0xff] %v1319
        %1336 = vst [vmem:[%s354 + $0x78] sm:$0xff] %v1320
      $region56: #{encoder_forward.1} parent=47 // pred_fallthru
        _
      %s1337 = smul.u32 16, %s22
      %p1338 = scmp.lt.s32.totalorder %s1337, 31
      %s1339 = scalar_select %p1338, %s1337, 31
      %s1340 = smul.addr %s1339, 8
      %s1341 = scalar_lea.vmem %s7, %s1340
      // Predicated region
      $region57: #{encoder_forward.1} parent=47 // pred_check
        %p1342 = pneg %p220
      $region58: #{encoder_forward.1} parent=47 // pred_check_branch
        %1344 = sbr.rel (%p1342) target = $region60
      $region59: #{encoder_forward.1} parent=47 // pred_region
        %s1345 = smul.u32 16, %s22
      $region60: #{encoder_forward.1} parent=47 // pred_fallthru
        _
    $region48: #{encoder_forward.1} parent=5 // pred_fallthru
      _
    %p1346 = scmp.le.s32.totalorder 2, %s13
    // Predicated region
    $region61: #{encoder_forward.1} parent=5 // pred_check
      %p1347 = pneg %p1346
    $region62: #{encoder_forward.1} parent=5 // pred_check_branch
      %1349 = sbr.rel (%p1347) target = $region64
    $region63: #{encoder_forward.1} parent=5 // pred_region
      %s1350 = ssub.s32 %s13, 2
      // Predicated region
      $region65: #{encoder_forward.1} parent=63 // pred_check
        %p1351 = pneg %p226
      $region66: #{encoder_forward.1} parent=63 // pred_check_branch
        %1353 = sbr.rel (%p1351) target = $region68
      $region67: #{encoder_forward.1} parent=63 // pred_region
        %s1354 = smul.u32 16, %s24
        %p1355 = scmp.lt.s32.totalorder %s1354, 31
        %s1356 = scalar_select %p1355, %s1354, 31
        %s1357 = smul.addr %s1356, 8
        %s1358 = scalar_lea.vmem %s7, %s1357
      $region68: #{encoder_forward.1} parent=63 // pred_fallthru
        _
    $region64: #{encoder_forward.1} parent=5 // pred_fallthru
      _
  $region6: #{encoder_forward.1} parent=0 // loop_footer
    %s17 = sadd.s32 1, %s13
  $region7: #{encoder_forward.1} parent=0 // loop_footer_branch
    %12 = sbr.rel target = $region3
  $region8: #{encoder_forward.1} parent=0 // loop_exit
    _

</llo_original>
